<compile_context>
chip_gen: v7x
topology: tpu7x:2x2x1
jax: 0.10.0
libtpu: 0.0.40
codegen_flags: <defaults>
</compile_context>

<pallas_src>
import functools

import jax
import jax.numpy as jnp
import numpy as np
from jax import lax
from jax.experimental import pallas as pl
from jax.experimental.pallas import tpu as pltpu

# ----------------------------- configuration -------------------------------
B, CIN, H, W = 2, 16, 16, 16          # input x: (B, CIN, H, W)  (NCHW)
PLANES = 64                            # PSAModule "planes"
C = PLANES // 4                        # split_channel = 16
RED = 16                               # SE reduction
CR = max(C // RED, 1)                  # SE hidden width
CONV_KERNELS = [3, 5, 7, 9]
CONV_GROUPS = [1, 4, 8, 16]
KMAX = max(CONV_KERNELS)               # 9 -- every branch embedded in 9x9
HW = H * W

# The in-kernel VPU SE path assumes the SE bottleneck collapses to one unit.
assert CR == 1, "kernel SE path assumes C // reduction == 1"


# ------------------------------- Pallas kernel -----------------------------
def _psa_kernel(x_ref, wc_ref, se_ref, out_ref, acc_ref, *, C, H, W, K):
    # x_ref : (H+K-1, W+K-1, CIN) bf16  zero-padded image (batch dim squeezed)
    # wc_ref: (K, K*CIN, 4C)      bf16  conv weights, one K=K*CIN group per kh
    #                                   row; output cols ordered [x4|x3|x2|x1]
    # se_ref: (4, C)              f32   rows = [fc1 w, fc2 w, fc2 b, fc1 b]
    # out_ref:(4C, H*W)           f32   channel-major weighted features
    # acc_ref:(H*W, 4C)           f32   VMEM scratch accumulator
    HW = H * W
    CIN = x_ref.shape[-1]

    acc_ref[...] = jnp.zeros_like(acc_ref)

    # ---- fused 9x9 conv: 9 lane-dense (HW, K*CIN) x (K*CIN, 4C) MXU dots ---
    def row_step(kh, carry):
        rows = x_ref[pl.ds(kh, H), :, :]                    # (H, W+K-1, CIN)
        wins = [rows[:, kw:kw + W, :].reshape(HW, CIN)      # static kw slices
                for kw in range(K)]
        lhs = jnp.concatenate(wins, axis=-1)                # (HW, K*CIN) bf16
        acc_ref[...] += jnp.dot(lhs, wc_ref[kh],
                                preferred_element_type=jnp.float32)
        return carry

    lax.fori_loop(0, K, row_step, 0)
    acc = acc_ref[...]                                      # (HW, 4C) f32

    # ---- global average pool (1/HW is a compile-time constant) -------------
    pooled = jnp.sum(acc, axis=0, keepdims=True) * (1.0 / HW)   # (1, 4C)
    # one row per branch, same [x4, x3, x2, x1] order as the feature columns
    pooled_b = jnp.concatenate(
        [pooled[:, i * C:(i + 1) * C] for i in range(4)], axis=0)   # (4, C)

    # ---- shared SE module on the VPU (hidden width == 1, no MXU) -----------
    w1r = se_ref[0:1, :]                                    # (1, C) fc1 weight
    w2r = se_ref[1:2, :]                                    # (1, C) fc2 weight
    b2r = se_ref[2:3, :]                                    # (1, C) fc2 bias
    b1v = se_ref[3:4, 0:1]                                  # (1, 1) fc1 bias
    h = jnp.sum(pooled_b * w1r, axis=1, keepdims=True) + b1v    # (4, 1)
    h = jnp.maximum(h, 0.0)                                 # ReLU
    s = jax.nn.sigmoid(h * w2r + b2r)                       # (4, C)

    # ---- softmax over the 4 branches (per channel), EUP reciprocal ----------
    m = jnp.max(s, axis=0, keepdims=True)
    e = jnp.exp(s - m)
    denom = jnp.sum(e, axis=0, keepdims=True)
    att = e * pl.reciprocal(denom, approx=True)             # (4, C)
    att_row = jnp.concatenate([att[i:i + 1, :] for i in range(4)], axis=1)

    # ---- weighted features: transpose once (XLU), ONE lane-dense store -----
    weighted = acc * att_row                                # (HW, 4C)
    out_ref[...] = jnp.transpose(weighted, (1, 0)).astype(out_ref.dtype)


# ------------------------------- wrapper ------------------------------------
@jax.jit
def psa_forward_pallas(x_nchw, wc_packed, se_par):
    Bz, cin, Hh, Ww = x_nchw.shape
    pad = KMAX // 2
    hw = Hh * Ww

    # NCHW -> NHWC, pad, single bf16 cast: only ~18 KB/image reaches the kernel.
    x_nhwc = jnp.transpose(x_nchw, (0, 2, 3, 1)).astype(jnp.bfloat16)
    xp = jnp.pad(x_nhwc, ((0, 0), (pad, pad), (pad, pad), (0, 0)))

    kernel = functools.partial(_psa_kernel, C=C, H=Hh, W=Ww, K=KMAX)
    # grid=(B,) "parallel": one image per TensorCore on dual-TC v7x.
    # TODO(synk): on single-TC v5e/v6e folding B into the matmul M dim would
    # shave one ~0.35us grid step; kept per-image for v7x 2-way occupancy.
    out = pl.pallas_call(
        kernel,
        out_shape=jax.ShapeDtypeStruct((Bz, 4 * C, hw), jnp.float32),
        grid_spec=pltpu.PrefetchScalarGridSpec(
            num_scalar_prefetch=0,
            grid=(Bz,),
            in_specs=[
                pl.BlockSpec((None, Hh + KMAX - 1, Ww + KMAX - 1, cin),
                             lambda b: (b, 0, 0, 0)),
                pl.BlockSpec((KMAX, KMAX * cin, 4 * C), lambda b: (0, 0, 0)),
                pl.BlockSpec((4, C), lambda b: (0, 0)),
            ],
            out_specs=pl.BlockSpec((None, 4 * C, hw), lambda b: (b, 0, 0)),
            scratch_shapes=[pltpu.VMEM((hw, 4 * C), jnp.float32)],
        ),
        compiler_params=pltpu.CompilerParams(
            dimension_semantics=("parallel",)),
    )(xp, wc_packed, se_par)

    # channel-major output: a pure reshape, no XLA transpose round-trip.
    return out.reshape(Bz, 4 * C, Hh, Ww)


# --------------------- parameter packing (glue) ------------------------------
def grouped_to_dense(w, groups, cin, kmax):
    """(Cout, cin//groups, k, k) grouped weight -> dense (Cout, cin, kmax, kmax)."""
    cout, cing, k, _ = w.shape
    dense = jnp.zeros((cout, cin, kmax, kmax), w.dtype)
    p = (kmax - k) // 2
    opg = cout // groups
    for g in range(groups):
        dense = dense.at[g * opg:(g + 1) * opg,
                         g * cing:(g + 1) * cing,
                         p:p + k, p:p + k].set(w[g * opg:(g + 1) * opg])
    return dense


def pack_conv_weights(conv_ws):
    """Pack the 4 grouped convs into a (9, 9*CIN, 4C) bf16 tensor: one K=144
    contraction group per kernel row kh, rows ordered (kw, cin), output columns
    already in the torch concat order [x4 | x3 | x2 | x1]."""
    dense = [grouped_to_dense(w, g, CIN, KMAX)
             for w, g in zip(conv_ws, CONV_GROUPS)]
    wc_dense = jnp.concatenate(dense[::-1], axis=0)          # (4C, CIN, 9, 9)
    wc = jnp.transpose(wc_dense, (2, 3, 1, 0))               # (9, 9, CIN, 4C)
    return wc.reshape(KMAX, KMAX * CIN, 4 * C).astype(jnp.bfloat16)


def pack_se_params(w1, b1, w2, b2):
    """One lane-dense (4, C) f32 block: rows = [fc1 w, fc2 w, fc2 b, fc1 b]."""
    return jnp.stack(
        [w1, w2, b2, jnp.full((C,), b1, jnp.float32)], axis=0
    ).astype(jnp.float32)


# ------------------------- pure-JAX reference --------------------------------
def psa_forward_ref(x, conv_ws, w1, b1, w2, b2):
    branch_outs = []
    for w, k, g in zip(conv_ws, CONV_KERNELS, CONV_GROUPS):
        y = lax.conv_general_dilated(
            x, w, (1, 1), [(k // 2, k // 2), (k // 2, k // 2)],
            dimension_numbers=('NCHW', 'OIHW', 'NCHW'),
            feature_group_count=g, precision=lax.Precision.HIGHEST)
        branch_outs.append(y)

    def se_fn(xi):
        p = jnp.mean(xi, axis=(2, 3))                        # (B, C)
        h = jnp.maximum(p @ w1.reshape(C, 1) + b1, 0.0)      # (B, 1)
        return jax.nn.sigmoid(h @ w2.reshape(1, C) + b2)     # (B, C)

    ses = jnp.stack([se_fn(y) for y in branch_outs], axis=1)     # (B, 4, C)
    att = jax.nn.softmax(ses, axis=1)
    feats = jnp.stack(branch_outs, axis=1)                       # (B, 4, C, H, W)
    fw = feats * att[..., None, None]
    return jnp.concatenate([fw[:, 3], fw[:, 2], fw[:, 1], fw[:, 0]], axis=1)


# ---------------------------------- main -------------------------------------
if __name__ == "__main__":
    key = jax.random.PRNGKey(0)
    keys = jax.random.split(key, 9)

    x = jax.random.normal(keys[0], (B, CIN, H, W), jnp.float32)

    # grouped conv weights (bias=False, as in the torch module)
    conv_ws = []
    for idx, (k, g) in enumerate(zip(CONV_KERNELS, CONV_GROUPS)):
        fan_in = (CIN // g) * k * k
        w = jax.random.normal(keys[1 + idx], (C, CIN // g, k, k),
                              jnp.float32) / np.sqrt(fan_in)
        conv_ws.append(w)

    # SE weights (1x1 convs with bias): fc1 C->1, fc2 1->C
    w1 = jax.random.normal(keys[5], (C,), jnp.float32) * 0.2
    b1 = jax.random.normal(keys[6], (), jnp.float32) * 0.1
    w2 = jax.random.normal(keys[7], (C,), jnp.float32) * 0.2
    b2 = jax.random.normal(keys[8], (C,), jnp.float32) * 0.1

    wc_packed = pack_conv_weights(conv_ws)                   # (9, 144, 64) bf16
    se_par = pack_se_params(w1, b1, w2, b2)                  # (4, C) f32

    out = psa_forward_pallas(x, wc_packed, se_par)
    out = jax.block_until_ready(out)

    ref = psa_forward_ref(x, conv_ws, w1, b1, w2, b2)
    assert out.shape == (B, PLANES, H, W)
    np.testing.assert_allclose(np.asarray(out), np.asarray(ref),
                               rtol=2e-2, atol=2e-2)
    print("KERNEL_OK")
</pallas_src>

<mosaic_0001>
module attributes {stable_mosaic.version = 11 : i64} {
  func.func @_psa_kernel(%arg0: i32, %arg1: memref<1x24x24x16xbf16, #tpu.memory_space<vmem>>, %arg2: memref<9x144x64xbf16, #tpu.memory_space<vmem>>, %arg3: memref<4x16xf32, #tpu.memory_space<vmem>>, %arg4: memref<1x64x256xf32, #tpu.memory_space<vmem>>, %arg5: memref<256x64xf32, #tpu.memory_space<vmem>>) attributes {dimension_semantics = [#tpu.dimension_semantics<parallel>], iteration_bounds = array<i64: 2>, scalar_prefetch = 0 : i64, scratch_operands = 1 : i64, tpu.core_type = #tpu.core_type<tc>, window_params = [{transform_indices = @transform_0, window_bounds = array<i64: 1, 24, 24, 16>}, {pipeline_mode = #tpu.pipeline_mode<synchronous>, transform_indices = @transform_1, window_bounds = array<i64: 9, 144, 64>}, {pipeline_mode = #tpu.pipeline_mode<synchronous>, transform_indices = @transform_2, window_bounds = array<i64: 4, 16>}, {transform_indices = @transform_3, window_bounds = array<i64: 1, 64, 256>}]} {
    %cst = arith.constant 0.000000e+00 : f32
    %0 = vector.broadcast %cst : f32 to vector<256x64xf32>
    %c0 = arith.constant 0 : index
    %c0_0 = arith.constant 0 : index
    %1 = vector.load %arg5[%c0, %c0_0] : memref<256x64xf32, #tpu.memory_space<vmem>>, vector<256x64xf32>
    tpu.vector_store %arg5[%c0, %c0_0], %0 {strides = array<i32>} : memref<256x64xf32, #tpu.memory_space<vmem>>, vector<256x64xf32>,
    %c0_i32 = arith.constant 0 : i32
    %c9_i32 = arith.constant 9 : i32
    %2 = arith.addi %c0_i32, %c9_i32 : i32
    %c1_i32 = arith.constant 1 : i32
    scf.for %arg6 = %c0_i32 to %2 step %c1_i32  : i32 {
      %c0_19 = arith.constant 0 : index
      %56 = arith.index_cast %arg6 : i32 to index
      %c0_20 = arith.constant 0 : index
      %c0_21 = arith.constant 0 : index
      %57 = vector.load %arg1[%c0_19, %56, %c0_20, %c0_21] : memref<1x24x24x16xbf16, #tpu.memory_space<vmem>>, vector<1x16x24x16xbf16>
      %58 = vector.shape_cast %57 : vector<1x16x24x16xbf16> to vector<16x24x16xbf16>
      %59 = vector.extract_strided_slice %58 {offsets = [0, 0, 0], sizes = [16, 16, 16], strides = [1, 1, 1]} : vector<16x24x16xbf16> to vector<16x16x16xbf16>
      %60 = vector.shape_cast %59 : vector<16x16x16xbf16> to vector<256x16xbf16>
      %61 = vector.extract_strided_slice %58 {offsets = [0, 1, 0], sizes = [16, 16, 16], strides = [1, 1, 1]} : vector<16x24x16xbf16> to vector<16x16x16xbf16>
      %62 = vector.shape_cast %61 : vector<16x16x16xbf16> to vector<256x16xbf16>
      %63 = vector.extract_strided_slice %58 {offsets = [0, 2, 0], sizes = [16, 16, 16], strides = [1, 1, 1]} : vector<16x24x16xbf16> to vector<16x16x16xbf16>
      %64 = vector.shape_cast %63 : vector<16x16x16xbf16> to vector<256x16xbf16>
      %65 = vector.extract_strided_slice %58 {offsets = [0, 3, 0], sizes = [16, 16, 16], strides = [1, 1, 1]} : vector<16x24x16xbf16> to vector<16x16x16xbf16>
      %66 = vector.shape_cast %65 : vector<16x16x16xbf16> to vector<256x16xbf16>
      %67 = vector.extract_strided_slice %58 {offsets = [0, 4, 0], sizes = [16, 16, 16], strides = [1, 1, 1]} : vector<16x24x16xbf16> to vector<16x16x16xbf16>
      %68 = vector.shape_cast %67 : vector<16x16x16xbf16> to vector<256x16xbf16>
      %69 = vector.extract_strided_slice %58 {offsets = [0, 5, 0], sizes = [16, 16, 16], strides = [1, 1, 1]} : vector<16x24x16xbf16> to vector<16x16x16xbf16>
      %70 = vector.shape_cast %69 : vector<16x16x16xbf16> to vector<256x16xbf16>
      %71 = vector.extract_strided_slice %58 {offsets = [0, 6, 0], sizes = [16, 16, 16], strides = [1, 1, 1]} : vector<16x24x16xbf16> to vector<16x16x16xbf16>
      %72 = vector.shape_cast %71 : vector<16x16x16xbf16> to vector<256x16xbf16>
      %73 = vector.extract_strided_slice %58 {offsets = [0, 7, 0], sizes = [16, 16, 16], strides = [1, 1, 1]} : vector<16x24x16xbf16> to vector<16x16x16xbf16>
      %74 = vector.shape_cast %73 : vector<16x16x16xbf16> to vector<256x16xbf16>
      %75 = vector.extract_strided_slice %58 {offsets = [0, 8, 0], sizes = [16, 16, 16], strides = [1, 1, 1]} : vector<16x24x16xbf16> to vector<16x16x16xbf16>
      %76 = vector.shape_cast %75 : vector<16x16x16xbf16> to vector<256x16xbf16>
      %77 = tpu.concatenate %60, %62, %64, %66, %68, %70, %72, %74, %76 in 1 : vector<256x16xbf16>, vector<256x16xbf16>, vector<256x16xbf16>, vector<256x16xbf16>, vector<256x16xbf16>, vector<256x16xbf16>, vector<256x16xbf16>, vector<256x16xbf16>, vector<256x16xbf16> -> vector<256x144xbf16>
      %c0_22 = arith.constant 0 : index
      %c0_23 = arith.constant 0 : index
      %78 = vector.load %arg5[%c0_22, %c0_23] : memref<256x64xf32, #tpu.memory_space<vmem>>, vector<256x64xf32>
      %79 = arith.index_cast %arg6 : i32 to index
      %c0_24 = arith.constant 0 : index
      %c0_25 = arith.constant 0 : index
      %80 = vector.load %arg2[%79, %c0_24, %c0_25] : memref<9x144x64xbf16, #tpu.memory_space<vmem>>, vector<1x144x64xbf16>
      %81 = vector.shape_cast %80 : vector<1x144x64xbf16> to vector<144x64xbf16>
      %cst_26 = arith.constant dense<0.000000e+00> : vector<256x64xf32>
      %82 = tpu.matmul %77, %81, %cst_26 {dimension_numbers = #tpu.dot_dimension_numbers<[1], [0], [0], [1], [0, 0, 1, 1], [], []>} : vector<256x144xbf16>, vector<144x64xbf16>, vector<256x64xf32> -> vector<256x64xf32>
      %83 = arith.addf %78, %82 : vector<256x64xf32>
      %c0_27 = arith.constant 0 : index
      %c0_28 = arith.constant 0 : index
      %84 = vector.load %arg5[%c0_27, %c0_28] : memref<256x64xf32, #tpu.memory_space<vmem>>, vector<256x64xf32>
      tpu.vector_store %arg5[%c0_27, %c0_28], %83 {strides = array<i32>} : memref<256x64xf32, #tpu.memory_space<vmem>>, vector<256x64xf32>,
    }
    %c9_i32_1 = arith.constant 9 : i32
    %c0_2 = arith.constant 0 : index
    %c0_3 = arith.constant 0 : index
    %3 = vector.load %arg5[%c0_2, %c0_3] : memref<256x64xf32, #tpu.memory_space<vmem>>, vector<256x64xf32>
    %cst_4 = arith.constant dense<0.000000e+00> : vector<64xf32>
    %4 = vector.multi_reduction <add>, %3, %cst_4 [0] : vector<256x64xf32> to vector<64xf32>
    %5 = vector.shape_cast %4 : vector<64xf32> to vector<1x64xf32>
    %cst_5 = arith.constant 3.906250e-03 : f32
    %6 = vector.broadcast %cst_5 : f32 to vector<1x64xf32>
    %7 = arith.mulf %5, %6 : vector<1x64xf32>
    %8 = vector.extract_strided_slice %7 {offsets = [0, 0], sizes = [1, 16], strides = [1, 1]} : vector<1x64xf32> to vector<1x16xf32>
    %9 = vector.extract_strided_slice %7 {offsets = [0, 16], sizes = [1, 16], strides = [1, 1]} : vector<1x64xf32> to vector<1x16xf32>
    %10 = vector.extract_strided_slice %7 {offsets = [0, 32], sizes = [1, 16], strides = [1, 1]} : vector<1x64xf32> to vector<1x16xf32>
    %11 = vector.extract_strided_slice %7 {offsets = [0, 48], sizes = [1, 16], strides = [1, 1]} : vector<1x64xf32> to vector<1x16xf32>
    %12 = tpu.concatenate %8, %9, %10, %11 in 0 : vector<1x16xf32>, vector<1x16xf32>, vector<1x16xf32>, vector<1x16xf32> -> vector<4x16xf32>
    %c0_6 = arith.constant 0 : index
    %c0_7 = arith.constant 0 : index
    %13 = vector.load %arg3[%c0_6, %c0_7] : memref<4x16xf32, #tpu.memory_space<vmem>>, vector<1x16xf32>
    %c1 = arith.constant 1 : index
    %c0_8 = arith.constant 0 : index
    %14 = vector.load %arg3[%c1, %c0_8] : memref<4x16xf32, #tpu.memory_space<vmem>>, vector<1x16xf32>
    %c2 = arith.constant 2 : index
    %c0_9 = arith.constant 0 : index
    %15 = vector.load %arg3[%c2, %c0_9] : memref<4x16xf32, #tpu.memory_space<vmem>>, vector<1x16xf32>
    %c3 = arith.constant 3 : index
    %c0_10 = arith.constant 0 : index
    %16 = vector.load %arg3[%c3, %c0_10] : memref<4x16xf32, #tpu.memory_space<vmem>>, vector<1x1xf32>
    %17 = vector.broadcast %13 : vector<1x16xf32> to vector<4x16xf32>
    %18 = arith.mulf %12, %17 : vector<4x16xf32>
    %cst_11 = arith.constant dense<0.000000e+00> : vector<4xf32>
    %19 = vector.multi_reduction <add>, %18, %cst_11 [1] : vector<4x16xf32> to vector<4xf32>
    %20 = vector.shape_cast %19 : vector<4xf32> to vector<4x1xf32>
    %21 = vector.broadcast %16 : vector<1x1xf32> to vector<4x1xf32>
    %22 = arith.addf %20, %21 : vector<4x1xf32>
    %cst_12 = arith.constant 0.000000e+00 : f32
    %23 = vector.broadcast %cst_12 : f32 to vector<4x1xf32>
    %24 = arith.maximumf %22, %23 : vector<4x1xf32>
    %25 = vector.broadcast %24 : vector<4x1xf32> to vector<4x16xf32>
    %26 = vector.broadcast %14 : vector<1x16xf32> to vector<4x16xf32>
    %27 = arith.mulf %25, %26 : vector<4x16xf32>
    %28 = vector.broadcast %15 : vector<1x16xf32> to vector<4x16xf32>
    %29 = arith.addf %27, %28 : vector<4x16xf32>
    %30 = arith.negf %29 : vector<4x16xf32>
    %31 = math.exp %30 : vector<4x16xf32>
    %cst_13 = arith.constant 1.000000e+00 : f32
    %32 = vector.broadcast %cst_13 : f32 to vector<4x16xf32>
    %33 = arith.addf %32, %31 : vector<4x16xf32>
    %34 = arith.divf %32, %33 : vector<4x16xf32>
    %cst_14 = arith.constant dense<0xFF800000> : vector<16xf32>
    %35 = vector.multi_reduction <maximumf>, %34, %cst_14 [0] : vector<4x16xf32> to vector<16xf32>
    %36 = vector.shape_cast %35 : vector<16xf32> to vector<1x16xf32>
    %37 = vector.broadcast %36 : vector<1x16xf32> to vector<4x16xf32>
    %38 = arith.subf %34, %37 : vector<4x16xf32>
    %39 = math.exp %38 : vector<4x16xf32>
    %cst_15 = arith.constant dense<0.000000e+00> : vector<16xf32>
    %40 = vector.multi_reduction <add>, %39, %cst_15 [0] : vector<4x16xf32> to vector<16xf32>
    %41 = vector.shape_cast %40 : vector<16xf32> to vector<1x16xf32>
    %42 = tpu.reciprocal %41 {approx = true} : vector<1x16xf32> -> vector<1x16xf32>
    %43 = vector.broadcast %42 : vector<1x16xf32> to vector<4x16xf32>
    %44 = arith.mulf %39, %43 : vector<4x16xf32>
    %45 = vector.extract_strided_slice %44 {offsets = [0, 0], sizes = [1, 16], strides = [1, 1]} : vector<4x16xf32> to vector<1x16xf32>
    %46 = vector.extract_strided_slice %44 {offsets = [1, 0], sizes = [1, 16], strides = [1, 1]} : vector<4x16xf32> to vector<1x16xf32>
    %47 = vector.extract_strided_slice %44 {offsets = [2, 0], sizes = [1, 16], strides = [1, 1]} : vector<4x16xf32> to vector<1x16xf32>
    %48 = vector.extract_strided_slice %44 {offsets = [3, 0], sizes = [1, 16], strides = [1, 1]} : vector<4x16xf32> to vector<1x16xf32>
    %49 = tpu.concatenate %45, %46, %47, %48 in 1 : vector<1x16xf32>, vector<1x16xf32>, vector<1x16xf32>, vector<1x16xf32> -> vector<1x64xf32>
    %50 = vector.broadcast %49 : vector<1x64xf32> to vector<256x64xf32>
    %51 = arith.mulf %3, %50 : vector<256x64xf32>
    %52 = tpu.transpose %51, [1, 0] : vector<256x64xf32> -> vector<64x256xf32>
    %c0_16 = arith.constant 0 : index
    %c0_17 = arith.constant 0 : index
    %c0_18 = arith.constant 0 : index
    %53 = vector.load %arg4[%c0_16, %c0_17, %c0_18] : memref<1x64x256xf32, #tpu.memory_space<vmem>>, vector<1x64x256xf32>
    %54 = vector.shape_cast %53 : vector<1x64x256xf32> to vector<64x256xf32>
    %55 = vector.shape_cast %52 : vector<64x256xf32> to vector<1x64x256xf32>
    tpu.vector_store %arg4[%c0_16, %c0_17, %c0_18], %55 {strides = array<i32>} : memref<1x64x256xf32, #tpu.memory_space<vmem>>, vector<1x64x256xf32>,
    return
  }
  func.func @transform_0(%arg0: i32) -> (i32, i32, i32, i32) {
    %c0_i32 = arith.constant 0 : i32
    %c0_i32_0 = arith.constant 0 : i32
    %c0_i32_1 = arith.constant 0 : i32
    %c0_i32_2 = arith.constant 0 : i32
    return %arg0, %c0_i32, %c0_i32_0, %c0_i32_1 : i32, i32, i32, i32
  }
  func.func @transform_1(%arg0: i32) -> (i32, i32, i32) {
    %c0_i32 = arith.constant 0 : i32
    %c0_i32_0 = arith.constant 0 : i32
    %c0_i32_1 = arith.constant 0 : i32
    %c0_i32_2 = arith.constant 0 : i32
    return %c0_i32, %c0_i32_0, %c0_i32_1 : i32, i32, i32
  }
  func.func @transform_2(%arg0: i32) -> (i32, i32) {
    %c0_i32 = arith.constant 0 : i32
    %c0_i32_0 = arith.constant 0 : i32
    %c0_i32_1 = arith.constant 0 : i32
    return %c0_i32, %c0_i32_0 : i32, i32
  }
  func.func @transform_3(%arg0: i32) -> (i32, i32, i32) {
    %c0_i32 = arith.constant 0 : i32
    %c0_i32_0 = arith.constant 0 : i32
    %c0_i32_1 = arith.constant 0 : i32
    return %arg0, %c0_i32, %c0_i32_0 : i32, i32, i32
  }
}

</mosaic_0001>

<llo_original>
// kernel: psa_forward_pallas.1
$region0: #{psa_forward_pallas.1}
  #allocation0 [shape = 'u32[]', space=smem, size = 0x4, offset = 0x4, fixed_abs, tag = 'smem constant byte address 0x4 - core index']
  #allocation1 [shape = 'u32[144,128]{1,0:T(1,128)}', space=vmem, size = 0x12000, scoped, tag = 'internal scratch']
  #allocation2 [shape = 'f32[256,64]{1,0:T(8,128)}', space=vmem, size = 0x20000, scoped, tag = 'scratch operand']
  %s0 = inlined_call_operand.vmem [shape: bf16[2,24,24,16], index: 0, kind: input, shape index: {}]
  %s1 = inlined_call_operand.vmem [shape: bf16[9,144,64], index: 1, kind: input, shape index: {}]
  %s2 = inlined_call_operand.vmem [shape: f32[4,16], index: 2, kind: input, shape index: {}]
  %s3 = inlined_call_operand.vmem [shape: f32[2,64,256], index: 3, kind: output, shape index: {}]
  %s4 = sld [smem:[#allocation0]]
  $region52: #{psa_forward_pallas.1} parent=0
    _
  %s6 = ssub.s32 1, %s4
  %s7 = scalar_select 0, %s6, %s4
  loop: start=0, step=1, limit=4
  $region2: #{psa_forward_pallas.1} parent=0 // loop_pre_header
    _
  $region3: #{psa_forward_pallas.1} parent=0 // loop_header
    %s9 = sphi 0, %s13
    %p10 = scmp.ge.s32.totalorder %s9, 4
    %s19 = sphi 0, %s21
    %s22 = sphi 0, %s19
    %s23 = sphi 0, %s22
    %s39 = sphi 0, %s23
    %s43 = sphi 0, %s43
    %s45 = sphi 0, %s43
    %s46 = sphi 0, %s45
    %s60 = sphi 0, %s46
    %s64 = sphi 0, %s64
    %s66 = sphi 0, %s64
    %s67 = sphi 0, %s66
    %s81 = sphi 0, %s67
    %s87 = sphi 0, %s89
    %s90 = sphi 0, %s87
    %s91 = sphi 0, %s90
    %s107 = sphi 0, %s91
  $region4: #{psa_forward_pallas.1} parent=0 // loop_header_branch
    %12 = sbr.rel (%p10) target = $region8
  $region5: #{psa_forward_pallas.1} parent=0 // loop_body
    %s14 = ssub.s32 %s9, 1
    %s15 = ssub.s32 %s9, 2
    %s16 = sadd.s32 %s9, 1
    %s17 = ssub.s32 %s9, %s16
    %p18 = scmp.eq.s32.totalorder %s17, 0
    %s20 = sadd.s32 %s19, 1
    %s21 = scalar_select %p18, %s19, %s20
    %p24 = pneg %p18
    %p25 = scmp.eq.s32.totalorder %s9, 1
    %p26 = por %p24, %p25
    %p27 = scmp.ne.s32.totalorder %s19, %s22
    %p28 = scmp.eq.s32.totalorder %s9, 0
    %p29 = por %p27, %p28
    %p30 = scmp.ne.s32.totalorder %s19, %s22
    %p31 = scmp.eq.s32.totalorder %s14, 1
    %p32 = por %p30, %p31
    %p33 = scmp.ne.s32.totalorder %s22, %s23
    %p34 = scmp.eq.s32.totalorder %s14, 0
    %p35 = por %p33, %p34
    %p36 = scmp.ne.s32.totalorder %s22, %s23
    %p37 = scmp.eq.s32.totalorder %s15, 1
    %p38 = por %p36, %p37
    %p40 = scmp.ne.s32.totalorder %s23, %s39
    %p41 = scmp.eq.s32.totalorder %s15, 0
    %p42 = por %p40, %p41
    %s44 = sadd.s32 %s43, 1
    %p47 = scmp.eq.s32.totalorder %s9, 1
    %p48 = scmp.ne.s32.totalorder %s43, %s45
    %p49 = scmp.eq.s32.totalorder %s9, 0
    %p50 = por %p48, %p49
    %p51 = scmp.ne.s32.totalorder %s43, %s45
    %p52 = scmp.eq.s32.totalorder %s14, 1
    %p53 = por %p51, %p52
    %p54 = scmp.ne.s32.totalorder %s45, %s46
    %p55 = scmp.eq.s32.totalorder %s14, 0
    %p56 = por %p54, %p55
    %p57 = scmp.ne.s32.totalorder %s45, %s46
    %p58 = scmp.eq.s32.totalorder %s15, 1
    %p59 = por %p57, %p58
    %p61 = scmp.ne.s32.totalorder %s46, %s60
    %p62 = scmp.eq.s32.totalorder %s15, 0
    %p63 = por %p61, %p62
    %s65 = sadd.s32 %s64, 1
    %p68 = scmp.eq.s32.totalorder %s9, 1
    %p69 = scmp.ne.s32.totalorder %s64, %s66
    %p70 = scmp.eq.s32.totalorder %s9, 0
    %p71 = por %p69, %p70
    %p72 = scmp.ne.s32.totalorder %s64, %s66
    %p73 = scmp.eq.s32.totalorder %s14, 1
    %p74 = por %p72, %p73
    %p75 = scmp.ne.s32.totalorder %s66, %s67
    %p76 = scmp.eq.s32.totalorder %s14, 0
    %p77 = por %p75, %p76
    %p78 = scmp.ne.s32.totalorder %s66, %s67
    %p79 = scmp.eq.s32.totalorder %s15, 1
    %p80 = por %p78, %p79
    %p82 = scmp.ne.s32.totalorder %s67, %s81
    %p83 = scmp.eq.s32.totalorder %s15, 0
    %p84 = por %p82, %p83
    %s85 = ssub.s32 %s9, %s16
    %p86 = scmp.eq.s32.totalorder %s85, 0
    %s88 = sadd.s32 %s87, 1
    %s89 = scalar_select %p86, %s87, %s88
    %p92 = pneg %p86
    %p93 = scmp.eq.s32.totalorder %s9, 1
    %p94 = por %p92, %p93
    %p95 = scmp.ne.s32.totalorder %s87, %s90
    %p96 = scmp.eq.s32.totalorder %s9, 0
    %p97 = por %p95, %p96
    %p98 = scmp.ne.s32.totalorder %s87, %s90
    %p99 = scmp.eq.s32.totalorder %s14, 1
    %p100 = por %p98, %p99
    %p101 = scmp.ne.s32.totalorder %s90, %s91
    %p102 = scmp.eq.s32.totalorder %s14, 0
    %p103 = por %p101, %p102
    %p104 = scmp.ne.s32.totalorder %s90, %s91
    %p105 = scmp.eq.s32.totalorder %s15, 1
    %p106 = por %p104, %p105
    %p108 = scmp.ne.s32.totalorder %s91, %s107
    %p109 = scmp.eq.s32.totalorder %s15, 0
    %p110 = por %p108, %p109
    %p111 = scmp.le.s32.totalorder 1, %s9
    %p112 = scmp.lt.s32.totalorder %s9, 3
    %p113 = pnand %p111, %p112
    %p114 = pneg %p113
    // Predicated region
    $region9: #{psa_forward_pallas.1} parent=5 // pred_check
      _
    $region10: #{psa_forward_pallas.1} parent=5 // pred_check_branch
      %116 = sbr.rel (%p113) target = $region12
    $region11: #{psa_forward_pallas.1} parent=5 // pred_region
      %s117 = ssub.s32 %s9, 1
      // Predicated region
      $region13: #{psa_forward_pallas.1} parent=11 // pred_check
        %p118 = pneg %p56
      $region14: #{psa_forward_pallas.1} parent=11 // pred_check_branch
        %120 = sbr.rel (%p118) target = $region16
      $region15: #{psa_forward_pallas.1} parent=11 // pred_region
        _
      $region16: #{psa_forward_pallas.1} parent=11 // pred_fallthru
        _
      // Predicated region
      $region17: #{psa_forward_pallas.1} parent=11 // pred_check
        %p121 = pneg %p77
      $region18: #{psa_forward_pallas.1} parent=11 // pred_check_branch
        %123 = sbr.rel (%p121) target = $region20
      $region19: #{psa_forward_pallas.1} parent=11 // pred_region
        _
      $region20: #{psa_forward_pallas.1} parent=11 // pred_fallthru
        _
    $region12: #{psa_forward_pallas.1} parent=5 // pred_fallthru
      _
    %p124 = scmp.lt.s32.totalorder %s9, 2
    // Predicated region
    $region21: #{psa_forward_pallas.1} parent=5 // pred_check
      %p125 = pneg %p124
    $region22: #{psa_forward_pallas.1} parent=5 // pred_check_branch
      %127 = sbr.rel (%p125) target = $region24
    $region23: #{psa_forward_pallas.1} parent=5 // pred_region
      // Predicated region
      $region25: #{psa_forward_pallas.1} parent=23 // pred_check
        %p128 = pneg %p29
      $region26: #{psa_forward_pallas.1} parent=23 // pred_check_branch
        %130 = sbr.rel (%p128) target = $region28
      $region27: #{psa_forward_pallas.1} parent=23 // pred_region
        %p131 = scmp.lt.s32.totalorder %s9, 1
        %s132 = scalar_select %p131, %s9, 1
        %s133 = smul.addr %s132, 72
        %s134 = smul.addr %s133, 4
        %s135 = scalar_lea.vmem %s0, %s134
      $region28: #{psa_forward_pallas.1} parent=23 // pred_fallthru
        _
    $region24: #{psa_forward_pallas.1} parent=5 // pred_fallthru
      _
    %p136 = scmp.le.s32.totalorder 1, %s9
    %p137 = scmp.lt.s32.totalorder %s9, 3
    %p138 = pnand %p136, %p137
    %p139 = pneg %p138
    // Predicated region
    $region29: #{psa_forward_pallas.1} parent=5 // pred_check
      _
    $region30: #{psa_forward_pallas.1} parent=5 // pred_check_branch
      %141 = sbr.rel (%p138) target = $region32
    $region31: #{psa_forward_pallas.1} parent=5 // pred_region
      %s142 = ssub.s32 %s9, 1
      %p143 = scmp.lt.s32.totalorder %s14, 1
      %s144 = scalar_select %p143, %s14, 1
      %s145 = smul.addr %s144, 72
      %s146 = smul.addr %s145, 4
      %s147 = scalar_lea.vmem %s0, %s146
      %p148 = pneg %p35
      %p149 = pneg %p32
      %p150 = pneg %p56
      %p151 = pneg %p53
      %p152 = pneg %p77
      %p153 = pneg %p74
      %p154 = pneg %p103
      %p155 = pneg %p100
      %p156 = scmp.lt.s32.totalorder %s14, 1
      %s157 = scalar_select %p156, %s14, 1
      %s158 = smul.addr %s157, 16
      %s159 = smul.addr %s158, 8
      %s160 = scalar_lea.vmem %s3, %s159
      %p161 = scmp.lt.s32.totalorder %s14, 1
      %s162 = scalar_select %p161, %s14, 1
      %s163 = smul.addr %s162, 72
      %s164 = smul.addr %s163, 4
      %s165 = scalar_lea.vmem %s0, %s164
      %p166 = scmp.lt.s32.totalorder %s14, 1
      %s167 = scalar_select %p166, %s14, 1
      %s168 = smul.addr %s167, 16
      %s169 = smul.addr %s168, 8
      %s170 = scalar_lea.vmem %s3, %s169
      %vm172 = vcmask 523264
      %173 = vst.msk [vmem:[#allocation2] sm:$0xff] %vm172, 0.0
      %174 = vst.msk [vmem:[#allocation2 + $0x8] sm:$0xff] %vm172, 0.0
      %175 = vst.msk [vmem:[#allocation2 + $0x10] sm:$0xff] %vm172, 0.0
      %176 = vst.msk [vmem:[#allocation2 + $0x18] sm:$0xff] %vm172, 0.0
      %177 = vst.msk [vmem:[#allocation2 + $0x20] sm:$0xff] %vm172, 0.0
      %178 = vst.msk [vmem:[#allocation2 + $0x28] sm:$0xff] %vm172, 0.0
      %179 = vst.msk [vmem:[#allocation2 + $0x30] sm:$0xff] %vm172, 0.0
      %180 = vst.msk [vmem:[#allocation2 + $0x38] sm:$0xff] %vm172, 0.0
      %181 = vst.msk [vmem:[#allocation2 + $0x40] sm:$0xff] %vm172, 0.0
      %182 = vst.msk [vmem:[#allocation2 + $0x48] sm:$0xff] %vm172, 0.0
      %183 = vst.msk [vmem:[#allocation2 + $0x50] sm:$0xff] %vm172, 0.0
      %184 = vst.msk [vmem:[#allocation2 + $0x58] sm:$0xff] %vm172, 0.0
      %185 = vst.msk [vmem:[#allocation2 + $0x60] sm:$0xff] %vm172, 0.0
      %186 = vst.msk [vmem:[#allocation2 + $0x68] sm:$0xff] %vm172, 0.0
      %187 = vst.msk [vmem:[#allocation2 + $0x70] sm:$0xff] %vm172, 0.0
      %188 = vst.msk [vmem:[#allocation2 + $0x78] sm:$0xff] %vm172, 0.0
      %189 = vst.msk [vmem:[#allocation2 + $0x80] sm:$0xff] %vm172, 0.0
      %190 = vst.msk [vmem:[#allocation2 + $0x88] sm:$0xff] %vm172, 0.0
      %191 = vst.msk [vmem:[#allocation2 + $0x90] sm:$0xff] %vm172, 0.0
      %192 = vst.msk [vmem:[#allocation2 + $0x98] sm:$0xff] %vm172, 0.0
      %193 = vst.msk [vmem:[#allocation2 + $0xa0] sm:$0xff] %vm172, 0.0
      %194 = vst.msk [vmem:[#allocation2 + $0xa8] sm:$0xff] %vm172, 0.0
      %195 = vst.msk [vmem:[#allocation2 + $0xb0] sm:$0xff] %vm172, 0.0
      %196 = vst.msk [vmem:[#allocation2 + $0xb8] sm:$0xff] %vm172, 0.0
      %197 = vst.msk [vmem:[#allocation2 + $0xc0] sm:$0xff] %vm172, 0.0
      %198 = vst.msk [vmem:[#allocation2 + $0xc8] sm:$0xff] %vm172, 0.0
      %199 = vst.msk [vmem:[#allocation2 + $0xd0] sm:$0xff] %vm172, 0.0
      %200 = vst.msk [vmem:[#allocation2 + $0xd8] sm:$0xff] %vm172, 0.0
      %201 = vst.msk [vmem:[#allocation2 + $0xe0] sm:$0xff] %vm172, 0.0
      %202 = vst.msk [vmem:[#allocation2 + $0xe8] sm:$0xff] %vm172, 0.0
      %203 = vst.msk [vmem:[#allocation2 + $0xf0] sm:$0xff] %vm172, 0.0
      %204 = vst.msk [vmem:[#allocation2 + $0xf8] sm:$0xff] %vm172, 0.0
      loop: start=0, step=1, limit=9
      $region33: #{psa_forward_pallas.1} parent=31 // loop_pre_header
        _
      $region34: #{psa_forward_pallas.1} parent=31 // loop_header
        %s206 = sphi 0, %s210
        %p207 = scmp.ge.s32.totalorder %s206, 9
      $region35: #{psa_forward_pallas.1} parent=31 // loop_header_branch
        %209 = sbr.rel (%p207) target = $region39
      $region36: #{psa_forward_pallas.1} parent=31 // loop_body
        %s211 = smul.u32 %s206, 3
        %s212 = smul.addr %s211, 4
        %s213 = scalar_lea.vmem %s165, %s212
        %v214 = vld [vmem:[%s213] sm:$0xf]
        %v215 = vld [vmem:[%s213 + $0x4] sm:$0xf]
        %v216 = vld [vmem:[%s213 + $0x8] sm:$0xf]
        %v217 = vld [vmem:[%s213 + $0xc] sm:$0xf]
        %v218 = vld [vmem:[%s213 + $0x10] sm:$0xf]
        %v219 = vld [vmem:[%s213 + $0x14] sm:$0xf]
        %v220 = vld [vmem:[%s213 + $0x18] sm:$0xf]
        %v221 = vld [vmem:[%s213 + $0x1c] sm:$0xf]
        %v222 = vld [vmem:[%s213 + $0x20] sm:$0xf]
        %v223 = vld [vmem:[%s213 + $0x24] sm:$0xf]
        %v224 = vld [vmem:[%s213 + $0x28] sm:$0xf]
        %v225 = vld [vmem:[%s213 + $0x2c] sm:$0xf]
        %v226 = vld [vmem:[%s213 + $0x30] sm:$0xf]
        %v227 = vld [vmem:[%s213 + $0x34] sm:$0xf]
        %v228 = vld [vmem:[%s213 + $0x38] sm:$0xf]
        %v229 = vld [vmem:[%s213 + $0x3c] sm:$0xf]
        %v230 = vld [vmem:[%s213 + $0x40] sm:$0xf]
        %v231 = vld [vmem:[%s213 + $0x44] sm:$0xf]
        %v232 = vld [vmem:[%s213 + $0x48] sm:$0xf]
        %v233 = vld [vmem:[%s213 + $0x4c] sm:$0xf]
        %v234 = vld [vmem:[%s213 + $0x50] sm:$0xf]
        %v235 = vld [vmem:[%s213 + $0x54] sm:$0xf]
        %v236 = vld [vmem:[%s213 + $0x58] sm:$0xf]
        %v237 = vld [vmem:[%s213 + $0x5c] sm:$0xf]
        %v238 = vld [vmem:[%s213 + $0x60] sm:$0xf]
        %v239 = vld [vmem:[%s213 + $0x64] sm:$0xf]
        %v240 = vld [vmem:[%s213 + $0x68] sm:$0xf]
        %v241 = vld [vmem:[%s213 + $0x6c] sm:$0xf]
        %v242 = vld [vmem:[%s213 + $0x70] sm:$0xf]
        %v243 = vld [vmem:[%s213 + $0x74] sm:$0xf]
        %v244 = vld [vmem:[%s213 + $0x78] sm:$0xf]
        %v245 = vld [vmem:[%s213 + $0x7c] sm:$0xf]
        %v246 = vld [vmem:[%s213 + $0x80] sm:$0xf]
        %v247 = vld [vmem:[%s213 + $0x84] sm:$0xf]
        %v248 = vld [vmem:[%s213 + $0x88] sm:$0xf]
        %v249 = vld [vmem:[%s213 + $0x8c] sm:$0xf]
        %v250 = vld [vmem:[%s213 + $0x90] sm:$0xf]
        %v251 = vld [vmem:[%s213 + $0x94] sm:$0xf]
        %v252 = vld [vmem:[%s213 + $0x98] sm:$0xf]
        %v253 = vld [vmem:[%s213 + $0x9c] sm:$0xf]
        %v254 = vld [vmem:[%s213 + $0xa0] sm:$0xf]
        %v255 = vld [vmem:[%s213 + $0xa4] sm:$0xf]
        %v256 = vld [vmem:[%s213 + $0xa8] sm:$0xf]
        %v257 = vld [vmem:[%s213 + $0xac] sm:$0xf]
        %v258 = vld [vmem:[%s213 + $0xb0] sm:$0xf]
        %v259 = vld [vmem:[%s213 + $0xb4] sm:$0xf]
        %v260 = vld [vmem:[%s213 + $0xb8] sm:$0xf]
        %v261 = vld [vmem:[%s213 + $0xbc] sm:$0xf]
        %vm262 = vsmask.f32 3328
        %vm263 = vsmask.f32 7440
        %vm264 = vmor %vm262, %vm263
        %v266 = vshrl.u32 %v214, 16
        %v268 = vrot.slane %v266, 4
        %v269 = vshll.u32 %v214, 16
        %v271 = vrot.slane %v269, 5
        %v272 = vor.u32 %v268, %v271
        %v273 = vrot.slane %v272, 4
        %v275 = vshll.u32 %v215, 16
        %v277 = vrot.slane %v275, 5
        %v278 = vsel %vm264, %v273, %v277
        %v279 = vshrl.u32 %v215, 16
        %v281 = vrot.slane %v279, 4
        %v282 = vor.u32 %v281, %v277
        %v283 = vrot.slane %v282, 4
        %v285 = vshll.u32 %v216, 16
        %v287 = vrot.slane %v285, 5
        %v288 = vsel %vm264, %v283, %v287
        %v290 = vshrl.u32 %v217, 16
        %v292 = vrot.slane %v290, 4
        %v293 = vshll.u32 %v217, 16
        %v295 = vrot.slane %v293, 5
        %v296 = vor.u32 %v292, %v295
        %v297 = vrot.slane %v296, 4
        %v299 = vshll.u32 %v218, 16
        %v301 = vrot.slane %v299, 5
        %v302 = vsel %vm264, %v297, %v301
        %v303 = vshrl.u32 %v218, 16
        %v305 = vrot.slane %v303, 4
        %v306 = vor.u32 %v305, %v301
        %v307 = vrot.slane %v306, 4
        %v309 = vshll.u32 %v219, 16
        %v311 = vrot.slane %v309, 5
        %v312 = vsel %vm264, %v307, %v311
        %v314 = vshrl.u32 %v220, 16
        %v316 = vrot.slane %v314, 4
        %v317 = vshll.u32 %v220, 16
        %v319 = vrot.slane %v317, 5
        %v320 = vor.u32 %v316, %v319
        %v321 = vrot.slane %v320, 4
        %v323 = vshll.u32 %v221, 16
        %v325 = vrot.slane %v323, 5
        %v326 = vsel %vm264, %v321, %v325
        %v327 = vshrl.u32 %v221, 16
        %v329 = vrot.slane %v327, 4
        %v330 = vor.u32 %v329, %v325
        %v331 = vrot.slane %v330, 4
        %v333 = vshll.u32 %v222, 16
        %v335 = vrot.slane %v333, 5
        %v336 = vsel %vm264, %v331, %v335
        %v338 = vshrl.u32 %v223, 16
        %v340 = vrot.slane %v338, 4
        %v341 = vshll.u32 %v223, 16
        %v343 = vrot.slane %v341, 5
        %v344 = vor.u32 %v340, %v343
        %v345 = vrot.slane %v344, 4
        %v347 = vshll.u32 %v224, 16
        %v349 = vrot.slane %v347, 5
        %v350 = vsel %vm264, %v345, %v349
        %v351 = vshrl.u32 %v224, 16
        %v353 = vrot.slane %v351, 4
        %v354 = vor.u32 %v353, %v349
        %v355 = vrot.slane %v354, 4
        %v357 = vshll.u32 %v225, 16
        %v359 = vrot.slane %v357, 5
        %v360 = vsel %vm264, %v355, %v359
        %v362 = vshrl.u32 %v226, 16
        %v364 = vrot.slane %v362, 4
        %v365 = vshll.u32 %v226, 16
        %v367 = vrot.slane %v365, 5
        %v368 = vor.u32 %v364, %v367
        %v369 = vrot.slane %v368, 4
        %v371 = vshll.u32 %v227, 16
        %v373 = vrot.slane %v371, 5
        %v374 = vsel %vm264, %v369, %v373
        %v375 = vshrl.u32 %v227, 16
        %v377 = vrot.slane %v375, 4
        %v378 = vor.u32 %v377, %v373
        %v379 = vrot.slane %v378, 4
        %v381 = vshll.u32 %v228, 16
        %v383 = vrot.slane %v381, 5
        %v384 = vsel %vm264, %v379, %v383
        %v386 = vshrl.u32 %v229, 16
        %v388 = vrot.slane %v386, 4
        %v389 = vshll.u32 %v229, 16
        %v391 = vrot.slane %v389, 5
        %v392 = vor.u32 %v388, %v391
        %v393 = vrot.slane %v392, 4
        %v395 = vshll.u32 %v230, 16
        %v397 = vrot.slane %v395, 5
        %v398 = vsel %vm264, %v393, %v397
        %v399 = vshrl.u32 %v230, 16
        %v401 = vrot.slane %v399, 4
        %v402 = vor.u32 %v401, %v397
        %v403 = vrot.slane %v402, 4
        %v405 = vshll.u32 %v231, 16
        %v407 = vrot.slane %v405, 5
        %v408 = vsel %vm264, %v403, %v407
        %v410 = vshrl.u32 %v232, 16
        %v412 = vrot.slane %v410, 4
        %v413 = vshll.u32 %v232, 16
        %v415 = vrot.slane %v413, 5
        %v416 = vor.u32 %v412, %v415
        %v417 = vrot.slane %v416, 4
        %v419 = vshll.u32 %v233, 16
        %v421 = vrot.slane %v419, 5
        %v422 = vsel %vm264, %v417, %v421
        %v423 = vshrl.u32 %v233, 16
        %v425 = vrot.slane %v423, 4
        %v426 = vor.u32 %v425, %v421
        %v427 = vrot.slane %v426, 4
        %v429 = vshll.u32 %v234, 16
        %v431 = vrot.slane %v429, 5
        %v432 = vsel %vm264, %v427, %v431
        %v434 = vshrl.u32 %v235, 16
        %v436 = vrot.slane %v434, 4
        %v437 = vshll.u32 %v235, 16
        %v439 = vrot.slane %v437, 5
        %v440 = vor.u32 %v436, %v439
        %v441 = vrot.slane %v440, 4
        %v443 = vshll.u32 %v236, 16
        %v445 = vrot.slane %v443, 5
        %v446 = vsel %vm264, %v441, %v445
        %v447 = vshrl.u32 %v236, 16
        %v449 = vrot.slane %v447, 4
        %v450 = vor.u32 %v449, %v445
        %v451 = vrot.slane %v450, 4
        %v453 = vshll.u32 %v237, 16
        %v455 = vrot.slane %v453, 5
        %v456 = vsel %vm264, %v451, %v455
        %v458 = vshrl.u32 %v238, 16
        %v460 = vrot.slane %v458, 4
        %v461 = vshll.u32 %v238, 16
        %v463 = vrot.slane %v461, 5
        %v464 = vor.u32 %v460, %v463
        %v465 = vrot.slane %v464, 4
        %v467 = vshll.u32 %v239, 16
        %v469 = vrot.slane %v467, 5
        %v470 = vsel %vm264, %v465, %v469
        %v471 = vshrl.u32 %v239, 16
        %v473 = vrot.slane %v471, 4
        %v474 = vor.u32 %v473, %v469
        %v475 = vrot.slane %v474, 4
        %v477 = vshll.u32 %v240, 16
        %v479 = vrot.slane %v477, 5
        %v480 = vsel %vm264, %v475, %v479
        %v482 = vshrl.u32 %v241, 16
        %v484 = vrot.slane %v482, 4
        %v485 = vshll.u32 %v241, 16
        %v487 = vrot.slane %v485, 5
        %v488 = vor.u32 %v484, %v487
        %v489 = vrot.slane %v488, 4
        %v491 = vshll.u32 %v242, 16
        %v493 = vrot.slane %v491, 5
        %v494 = vsel %vm264, %v489, %v493
        %v495 = vshrl.u32 %v242, 16
        %v497 = vrot.slane %v495, 4
        %v498 = vor.u32 %v497, %v493
        %v499 = vrot.slane %v498, 4
        %v501 = vshll.u32 %v243, 16
        %v503 = vrot.slane %v501, 5
        %v504 = vsel %vm264, %v499, %v503
        %v506 = vshrl.u32 %v244, 16
        %v508 = vrot.slane %v506, 4
        %v509 = vshll.u32 %v244, 16
        %v511 = vrot.slane %v509, 5
        %v512 = vor.u32 %v508, %v511
        %v513 = vrot.slane %v512, 4
        %v515 = vshll.u32 %v245, 16
        %v517 = vrot.slane %v515, 5
        %v518 = vsel %vm264, %v513, %v517
        %v519 = vshrl.u32 %v245, 16
        %v521 = vrot.slane %v519, 4
        %v522 = vor.u32 %v521, %v517
        %v523 = vrot.slane %v522, 4
        %v525 = vshll.u32 %v246, 16
        %v527 = vrot.slane %v525, 5
        %v528 = vsel %vm264, %v523, %v527
        %v530 = vshrl.u32 %v247, 16
        %v532 = vrot.slane %v530, 4
        %v533 = vshll.u32 %v247, 16
        %v535 = vrot.slane %v533, 5
        %v536 = vor.u32 %v532, %v535
        %v537 = vrot.slane %v536, 4
        %v539 = vshll.u32 %v248, 16
        %v541 = vrot.slane %v539, 5
        %v542 = vsel %vm264, %v537, %v541
        %v543 = vshrl.u32 %v248, 16
        %v545 = vrot.slane %v543, 4
        %v546 = vor.u32 %v545, %v541
        %v547 = vrot.slane %v546, 4
        %v549 = vshll.u32 %v249, 16
        %v551 = vrot.slane %v549, 5
        %v552 = vsel %vm264, %v547, %v551
        %v554 = vshrl.u32 %v250, 16
        %v556 = vrot.slane %v554, 4
        %v557 = vshll.u32 %v250, 16
        %v559 = vrot.slane %v557, 5
        %v560 = vor.u32 %v556, %v559
        %v561 = vrot.slane %v560, 4
        %v563 = vshll.u32 %v251, 16
        %v565 = vrot.slane %v563, 5
        %v566 = vsel %vm264, %v561, %v565
        %v567 = vshrl.u32 %v251, 16
        %v569 = vrot.slane %v567, 4
        %v570 = vor.u32 %v569, %v565
        %v571 = vrot.slane %v570, 4
        %v573 = vshll.u32 %v252, 16
        %v575 = vrot.slane %v573, 5
        %v576 = vsel %vm264, %v571, %v575
        %v578 = vshrl.u32 %v253, 16
        %v580 = vrot.slane %v578, 4
        %v581 = vshll.u32 %v253, 16
        %v583 = vrot.slane %v581, 5
        %v584 = vor.u32 %v580, %v583
        %v585 = vrot.slane %v584, 4
        %v587 = vshll.u32 %v254, 16
        %v589 = vrot.slane %v587, 5
        %v590 = vsel %vm264, %v585, %v589
        %v591 = vshrl.u32 %v254, 16
        %v593 = vrot.slane %v591, 4
        %v594 = vor.u32 %v593, %v589
        %v595 = vrot.slane %v594, 4
        %v597 = vshll.u32 %v255, 16
        %v599 = vrot.slane %v597, 5
        %v600 = vsel %vm264, %v595, %v599
        %v602 = vshrl.u32 %v256, 16
        %v604 = vrot.slane %v602, 4
        %v605 = vshll.u32 %v256, 16
        %v607 = vrot.slane %v605, 5
        %v608 = vor.u32 %v604, %v607
        %v609 = vrot.slane %v608, 4
        %v611 = vshll.u32 %v257, 16
        %v613 = vrot.slane %v611, 5
        %v614 = vsel %vm264, %v609, %v613
        %v615 = vshrl.u32 %v257, 16
        %v617 = vrot.slane %v615, 4
        %v618 = vor.u32 %v617, %v613
        %v619 = vrot.slane %v618, 4
        %v621 = vshll.u32 %v258, 16
        %v623 = vrot.slane %v621, 5
        %v624 = vsel %vm264, %v619, %v623
        %v626 = vshrl.u32 %v259, 16
        %v628 = vrot.slane %v626, 4
        %v629 = vshll.u32 %v259, 16
        %v631 = vrot.slane %v629, 5
        %v632 = vor.u32 %v628, %v631
        %v633 = vrot.slane %v632, 4
        %v635 = vshll.u32 %v260, 16
        %v637 = vrot.slane %v635, 5
        %v638 = vsel %vm264, %v633, %v637
        %v639 = vshrl.u32 %v260, 16
        %v641 = vrot.slane %v639, 4
        %v642 = vor.u32 %v641, %v637
        %v643 = vrot.slane %v642, 4
        %v645 = vshll.u32 %v261, 16
        %v647 = vrot.slane %v645, 5
        %v648 = vsel %vm264, %v643, %v647
        %vm697 = vcmask 1042432
        %vm698 = vcmask 1046532
        %vm699 = vmor %vm697, %vm698
        %v700 = vrot.slane %v214, 5
        %v701 = vrot.slane %v700, 4
        %v702 = vrot.slane %v215, 5
        %v703 = vsel %vm699, %v701, %v702
        %v704 = vrot.slane %v702, 4
        %v705 = vrot.slane %v216, 5
        %v706 = vsel %vm699, %v704, %v705
        %v707 = vrot.slane %v217, 5
        %v708 = vrot.slane %v707, 4
        %v709 = vrot.slane %v218, 5
        %v710 = vsel %vm699, %v708, %v709
        %v711 = vrot.slane %v709, 4
        %v712 = vrot.slane %v219, 5
        %v713 = vsel %vm699, %v711, %v712
        %v714 = vrot.slane %v220, 5
        %v715 = vrot.slane %v714, 4
        %v716 = vrot.slane %v221, 5
        %v717 = vsel %vm699, %v715, %v716
        %v718 = vrot.slane %v716, 4
        %v719 = vrot.slane %v222, 5
        %v720 = vsel %vm699, %v718, %v719
        %v721 = vrot.slane %v223, 5
        %v722 = vrot.slane %v721, 4
        %v723 = vrot.slane %v224, 5
        %v724 = vsel %vm699, %v722, %v723
        %v725 = vrot.slane %v723, 4
        %v726 = vrot.slane %v225, 5
        %v727 = vsel %vm699, %v725, %v726
        %v728 = vrot.slane %v226, 5
        %v729 = vrot.slane %v728, 4
        %v730 = vrot.slane %v227, 5
        %v731 = vsel %vm699, %v729, %v730
        %v732 = vrot.slane %v730, 4
        %v733 = vrot.slane %v228, 5
        %v734 = vsel %vm699, %v732, %v733
        %v735 = vrot.slane %v229, 5
        %v736 = vrot.slane %v735, 4
        %v737 = vrot.slane %v230, 5
        %v738 = vsel %vm699, %v736, %v737
        %v739 = vrot.slane %v737, 4
        %v740 = vrot.slane %v231, 5
        %v741 = vsel %vm699, %v739, %v740
        %v742 = vrot.slane %v232, 5
        %v743 = vrot.slane %v742, 4
        %v744 = vrot.slane %v233, 5
        %v745 = vsel %vm699, %v743, %v744
        %v746 = vrot.slane %v744, 4
        %v747 = vrot.slane %v234, 5
        %v748 = vsel %vm699, %v746, %v747
        %v749 = vrot.slane %v235, 5
        %v750 = vrot.slane %v749, 4
        %v751 = vrot.slane %v236, 5
        %v752 = vsel %vm699, %v750, %v751
        %v753 = vrot.slane %v751, 4
        %v754 = vrot.slane %v237, 5
        %v755 = vsel %vm699, %v753, %v754
        %v756 = vrot.slane %v238, 5
        %v757 = vrot.slane %v756, 4
        %v758 = vrot.slane %v239, 5
        %v759 = vsel %vm699, %v757, %v758
        %v760 = vrot.slane %v758, 4
        %v761 = vrot.slane %v240, 5
        %v762 = vsel %vm699, %v760, %v761
        %v763 = vrot.slane %v241, 5
        %v764 = vrot.slane %v763, 4
        %v765 = vrot.slane %v242, 5
        %v766 = vsel %vm699, %v764, %v765
        %v767 = vrot.slane %v765, 4
        %v768 = vrot.slane %v243, 5
        %v769 = vsel %vm699, %v767, %v768
        %v770 = vrot.slane %v244, 5
        %v771 = vrot.slane %v770, 4
        %v772 = vrot.slane %v245, 5
        %v773 = vsel %vm699, %v771, %v772
        %v774 = vrot.slane %v772, 4
        %v775 = vrot.slane %v246, 5
        %v776 = vsel %vm699, %v774, %v775
        %v777 = vrot.slane %v247, 5
        %v778 = vrot.slane %v777, 4
        %v779 = vrot.slane %v248, 5
        %v780 = vsel %vm699, %v778, %v779
        %v781 = vrot.slane %v779, 4
        %v782 = vrot.slane %v249, 5
        %v783 = vsel %vm699, %v781, %v782
        %v784 = vrot.slane %v250, 5
        %v785 = vrot.slane %v784, 4
        %v786 = vrot.slane %v251, 5
        %v787 = vsel %vm699, %v785, %v786
        %v788 = vrot.slane %v786, 4
        %v789 = vrot.slane %v252, 5
        %v790 = vsel %vm699, %v788, %v789
        %v791 = vrot.slane %v253, 5
        %v792 = vrot.slane %v791, 4
        %v793 = vrot.slane %v254, 5
        %v794 = vsel %vm699, %v792, %v793
        %v795 = vrot.slane %v793, 4
        %v796 = vrot.slane %v255, 5
        %v797 = vsel %vm699, %v795, %v796
        %v798 = vrot.slane %v256, 5
        %v799 = vrot.slane %v798, 4
        %v800 = vrot.slane %v257, 5
        %v801 = vsel %vm699, %v799, %v800
        %v802 = vrot.slane %v800, 4
        %v803 = vrot.slane %v258, 5
        %v804 = vsel %vm699, %v802, %v803
        %v805 = vrot.slane %v259, 5
        %v806 = vrot.slane %v805, 4
        %v807 = vrot.slane %v260, 5
        %v808 = vsel %vm699, %v806, %v807
        %v809 = vrot.slane %v807, 4
        %v810 = vrot.slane %v261, 5
        %v811 = vsel %vm699, %v809, %v810
        %vm812 = vsmask.f32 2304
        %vm813 = vsmask.f32 6416
        %vm814 = vmor %vm812, %vm813
        %v815 = vrot.slane %v266, 5
        %v816 = vrot.slane %v269, 6
        %v817 = vor.u32 %v815, %v816
        %v818 = vrot.slane %v817, 4
        %v819 = vrot.slane %v279, 5
        %v820 = vrot.slane %v275, 6
        %v821 = vor.u32 %v819, %v820
        %v822 = vsel %vm814, %v818, %v821
        %v823 = vrot.slane %v821, 4
        %v824 = vshrl.u32 %v216, 16
        %v826 = vrot.slane %v824, 5
        %v827 = vrot.slane %v285, 6
        %v828 = vor.u32 %v826, %v827
        %v829 = vsel %vm814, %v823, %v828
        %v830 = vrot.slane %v290, 5
        %v831 = vrot.slane %v293, 6
        %v832 = vor.u32 %v830, %v831
        %v833 = vrot.slane %v832, 4
        %v834 = vrot.slane %v303, 5
        %v835 = vrot.slane %v299, 6
        %v836 = vor.u32 %v834, %v835
        %v837 = vsel %vm814, %v833, %v836
        %v838 = vrot.slane %v836, 4
        %v839 = vshrl.u32 %v219, 16
        %v841 = vrot.slane %v839, 5
        %v842 = vrot.slane %v309, 6
        %v843 = vor.u32 %v841, %v842
        %v844 = vsel %vm814, %v838, %v843
        %v845 = vrot.slane %v314, 5
        %v846 = vrot.slane %v317, 6
        %v847 = vor.u32 %v845, %v846
        %v848 = vrot.slane %v847, 4
        %v849 = vrot.slane %v327, 5
        %v850 = vrot.slane %v323, 6
        %v851 = vor.u32 %v849, %v850
        %v852 = vsel %vm814, %v848, %v851
        %v853 = vrot.slane %v851, 4
        %v854 = vshrl.u32 %v222, 16
        %v856 = vrot.slane %v854, 5
        %v857 = vrot.slane %v333, 6
        %v858 = vor.u32 %v856, %v857
        %v859 = vsel %vm814, %v853, %v858
        %v860 = vrot.slane %v338, 5
        %v861 = vrot.slane %v341, 6
        %v862 = vor.u32 %v860, %v861
        %v863 = vrot.slane %v862, 4
        %v864 = vrot.slane %v351, 5
        %v865 = vrot.slane %v347, 6
        %v866 = vor.u32 %v864, %v865
        %v867 = vsel %vm814, %v863, %v866
        %v868 = vrot.slane %v866, 4
        %v869 = vshrl.u32 %v225, 16
        %v871 = vrot.slane %v869, 5
        %v872 = vrot.slane %v357, 6
        %v873 = vor.u32 %v871, %v872
        %v874 = vsel %vm814, %v868, %v873
        %v875 = vrot.slane %v362, 5
        %v876 = vrot.slane %v365, 6
        %v877 = vor.u32 %v875, %v876
        %v878 = vrot.slane %v877, 4
        %v879 = vrot.slane %v375, 5
        %v880 = vrot.slane %v371, 6
        %v881 = vor.u32 %v879, %v880
        %v882 = vsel %vm814, %v878, %v881
        %v883 = vrot.slane %v881, 4
        %v884 = vshrl.u32 %v228, 16
        %v886 = vrot.slane %v884, 5
        %v887 = vrot.slane %v381, 6
        %v888 = vor.u32 %v886, %v887
        %v889 = vsel %vm814, %v883, %v888
        %v890 = vrot.slane %v386, 5
        %v891 = vrot.slane %v389, 6
        %v892 = vor.u32 %v890, %v891
        %v893 = vrot.slane %v892, 4
        %v894 = vrot.slane %v399, 5
        %v895 = vrot.slane %v395, 6
        %v896 = vor.u32 %v894, %v895
        %v897 = vsel %vm814, %v893, %v896
        %v898 = vrot.slane %v896, 4
        %v899 = vshrl.u32 %v231, 16
        %v901 = vrot.slane %v899, 5
        %v902 = vrot.slane %v405, 6
        %v903 = vor.u32 %v901, %v902
        %v904 = vsel %vm814, %v898, %v903
        %v905 = vrot.slane %v410, 5
        %v906 = vrot.slane %v413, 6
        %v907 = vor.u32 %v905, %v906
        %v908 = vrot.slane %v907, 4
        %v909 = vrot.slane %v423, 5
        %v910 = vrot.slane %v419, 6
        %v911 = vor.u32 %v909, %v910
        %v912 = vsel %vm814, %v908, %v911
        %v913 = vrot.slane %v911, 4
        %v914 = vshrl.u32 %v234, 16
        %v916 = vrot.slane %v914, 5
        %v917 = vrot.slane %v429, 6
        %v918 = vor.u32 %v916, %v917
        %v919 = vsel %vm814, %v913, %v918
        %v920 = vrot.slane %v434, 5
        %v921 = vrot.slane %v437, 6
        %v922 = vor.u32 %v920, %v921
        %v923 = vrot.slane %v922, 4
        %v924 = vrot.slane %v447, 5
        %v925 = vrot.slane %v443, 6
        %v926 = vor.u32 %v924, %v925
        %v927 = vsel %vm814, %v923, %v926
        %v928 = vrot.slane %v926, 4
        %v929 = vshrl.u32 %v237, 16
        %v931 = vrot.slane %v929, 5
        %v932 = vrot.slane %v453, 6
        %v933 = vor.u32 %v931, %v932
        %v934 = vsel %vm814, %v928, %v933
        %v935 = vrot.slane %v458, 5
        %v936 = vrot.slane %v461, 6
        %v937 = vor.u32 %v935, %v936
        %v938 = vrot.slane %v937, 4
        %v939 = vrot.slane %v471, 5
        %v940 = vrot.slane %v467, 6
        %v941 = vor.u32 %v939, %v940
        %v942 = vsel %vm814, %v938, %v941
        %v943 = vrot.slane %v941, 4
        %v944 = vshrl.u32 %v240, 16
        %v946 = vrot.slane %v944, 5
        %v947 = vrot.slane %v477, 6
        %v948 = vor.u32 %v946, %v947
        %v949 = vsel %vm814, %v943, %v948
        %v950 = vrot.slane %v482, 5
        %v951 = vrot.slane %v485, 6
        %v952 = vor.u32 %v950, %v951
        %v953 = vrot.slane %v952, 4
        %v954 = vrot.slane %v495, 5
        %v955 = vrot.slane %v491, 6
        %v956 = vor.u32 %v954, %v955
        %v957 = vsel %vm814, %v953, %v956
        %v958 = vrot.slane %v956, 4
        %v959 = vshrl.u32 %v243, 16
        %v961 = vrot.slane %v959, 5
        %v962 = vrot.slane %v501, 6
        %v963 = vor.u32 %v961, %v962
        %v964 = vsel %vm814, %v958, %v963
        %v965 = vrot.slane %v506, 5
        %v966 = vrot.slane %v509, 6
        %v967 = vor.u32 %v965, %v966
        %v968 = vrot.slane %v967, 4
        %v969 = vrot.slane %v519, 5
        %v970 = vrot.slane %v515, 6
        %v971 = vor.u32 %v969, %v970
        %v972 = vsel %vm814, %v968, %v971
        %v973 = vrot.slane %v971, 4
        %v974 = vshrl.u32 %v246, 16
        %v976 = vrot.slane %v974, 5
        %v977 = vrot.slane %v525, 6
        %v978 = vor.u32 %v976, %v977
        %v979 = vsel %vm814, %v973, %v978
        %v980 = vrot.slane %v530, 5
        %v981 = vrot.slane %v533, 6
        %v982 = vor.u32 %v980, %v981
        %v983 = vrot.slane %v982, 4
        %v984 = vrot.slane %v543, 5
        %v985 = vrot.slane %v539, 6
        %v986 = vor.u32 %v984, %v985
        %v987 = vsel %vm814, %v983, %v986
        %v988 = vrot.slane %v986, 4
        %v989 = vshrl.u32 %v249, 16
        %v991 = vrot.slane %v989, 5
        %v992 = vrot.slane %v549, 6
        %v993 = vor.u32 %v991, %v992
        %v994 = vsel %vm814, %v988, %v993
        %v995 = vrot.slane %v554, 5
        %v996 = vrot.slane %v557, 6
        %v997 = vor.u32 %v995, %v996
        %v998 = vrot.slane %v997, 4
        %v999 = vrot.slane %v567, 5
        %v1000 = vrot.slane %v563, 6
        %v1001 = vor.u32 %v999, %v1000
        %v1002 = vsel %vm814, %v998, %v1001
        %v1003 = vrot.slane %v1001, 4
        %v1004 = vshrl.u32 %v252, 16
        %v1006 = vrot.slane %v1004, 5
        %v1007 = vrot.slane %v573, 6
        %v1008 = vor.u32 %v1006, %v1007
        %v1009 = vsel %vm814, %v1003, %v1008
        %v1010 = vrot.slane %v578, 5
        %v1011 = vrot.slane %v581, 6
        %v1012 = vor.u32 %v1010, %v1011
        %v1013 = vrot.slane %v1012, 4
        %v1014 = vrot.slane %v591, 5
        %v1015 = vrot.slane %v587, 6
        %v1016 = vor.u32 %v1014, %v1015
        %v1017 = vsel %vm814, %v1013, %v1016
        %v1018 = vrot.slane %v1016, 4
        %v1019 = vshrl.u32 %v255, 16
        %v1021 = vrot.slane %v1019, 5
        %v1022 = vrot.slane %v597, 6
        %v1023 = vor.u32 %v1021, %v1022
        %v1024 = vsel %vm814, %v1018, %v1023
        %v1025 = vrot.slane %v602, 5
        %v1026 = vrot.slane %v605, 6
        %v1027 = vor.u32 %v1025, %v1026
        %v1028 = vrot.slane %v1027, 4
        %v1029 = vrot.slane %v615, 5
        %v1030 = vrot.slane %v611, 6
        %v1031 = vor.u32 %v1029, %v1030
        %v1032 = vsel %vm814, %v1028, %v1031
        %v1033 = vrot.slane %v1031, 4
        %v1034 = vshrl.u32 %v258, 16
        %v1036 = vrot.slane %v1034, 5
        %v1037 = vrot.slane %v621, 6
        %v1038 = vor.u32 %v1036, %v1037
        %v1039 = vsel %vm814, %v1033, %v1038
        %v1040 = vrot.slane %v626, 5
        %v1041 = vrot.slane %v629, 6
        %v1042 = vor.u32 %v1040, %v1041
        %v1043 = vrot.slane %v1042, 4
        %v1044 = vrot.slane %v639, 5
        %v1045 = vrot.slane %v635, 6
        %v1046 = vor.u32 %v1044, %v1045
        %v1047 = vsel %vm814, %v1043, %v1046
        %v1048 = vrot.slane %v1046, 4
        %v1049 = vshrl.u32 %v261, 16
        %v1051 = vrot.slane %v1049, 5
        %v1052 = vrot.slane %v645, 6
        %v1053 = vor.u32 %v1051, %v1052
        %v1054 = vsel %vm814, %v1048, %v1053
        %vm1055 = vcmask 1041408
        %vm1056 = vcmask 1045508
        %vm1057 = vmor %vm1055, %vm1056
        %v1058 = vrot.slane %v214, 6
        %v1059 = vrot.slane %v1058, 4
        %v1060 = vrot.slane %v215, 6
        %v1061 = vsel %vm1057, %v1059, %v1060
        %v1062 = vrot.slane %v1060, 4
        %v1063 = vrot.slane %v216, 6
        %v1064 = vsel %vm1057, %v1062, %v1063
        %v1065 = vrot.slane %v217, 6
        %v1066 = vrot.slane %v1065, 4
        %v1067 = vrot.slane %v218, 6
        %v1068 = vsel %vm1057, %v1066, %v1067
        %v1069 = vrot.slane %v1067, 4
        %v1070 = vrot.slane %v219, 6
        %v1071 = vsel %vm1057, %v1069, %v1070
        %v1072 = vrot.slane %v220, 6
        %v1073 = vrot.slane %v1072, 4
        %v1074 = vrot.slane %v221, 6
        %v1075 = vsel %vm1057, %v1073, %v1074
        %v1076 = vrot.slane %v1074, 4
        %v1077 = vrot.slane %v222, 6
        %v1078 = vsel %vm1057, %v1076, %v1077
        %v1079 = vrot.slane %v223, 6
        %v1080 = vrot.slane %v1079, 4
        %v1081 = vrot.slane %v224, 6
        %v1082 = vsel %vm1057, %v1080, %v1081
        %v1083 = vrot.slane %v1081, 4
        %v1084 = vrot.slane %v225, 6
        %v1085 = vsel %vm1057, %v1083, %v1084
        %v1086 = vrot.slane %v226, 6
        %v1087 = vrot.slane %v1086, 4
        %v1088 = vrot.slane %v227, 6
        %v1089 = vsel %vm1057, %v1087, %v1088
        %v1090 = vrot.slane %v1088, 4
        %v1091 = vrot.slane %v228, 6
        %v1092 = vsel %vm1057, %v1090, %v1091
        %v1093 = vrot.slane %v229, 6
        %v1094 = vrot.slane %v1093, 4
        %v1095 = vrot.slane %v230, 6
        %v1096 = vsel %vm1057, %v1094, %v1095
        %v1097 = vrot.slane %v1095, 4
        %v1098 = vrot.slane %v231, 6
        %v1099 = vsel %vm1057, %v1097, %v1098
        %v1100 = vrot.slane %v232, 6
        %v1101 = vrot.slane %v1100, 4
        %v1102 = vrot.slane %v233, 6
        %v1103 = vsel %vm1057, %v1101, %v1102
        %v1104 = vrot.slane %v1102, 4
        %v1105 = vrot.slane %v234, 6
        %v1106 = vsel %vm1057, %v1104, %v1105
        %v1107 = vrot.slane %v235, 6
        %v1108 = vrot.slane %v1107, 4
        %v1109 = vrot.slane %v236, 6
        %v1110 = vsel %vm1057, %v1108, %v1109
        %v1111 = vrot.slane %v1109, 4
        %v1112 = vrot.slane %v237, 6
        %v1113 = vsel %vm1057, %v1111, %v1112
        %v1114 = vrot.slane %v238, 6
        %v1115 = vrot.slane %v1114, 4
        %v1116 = vrot.slane %v239, 6
        %v1117 = vsel %vm1057, %v1115, %v1116
        %v1118 = vrot.slane %v1116, 4
        %v1119 = vrot.slane %v240, 6
        %v1120 = vsel %vm1057, %v1118, %v1119
        %v1121 = vrot.slane %v241, 6
        %v1122 = vrot.slane %v1121, 4
        %v1123 = vrot.slane %v242, 6
        %v1124 = vsel %vm1057, %v1122, %v1123
        %v1125 = vrot.slane %v1123, 4
        %v1126 = vrot.slane %v243, 6
        %v1127 = vsel %vm1057, %v1125, %v1126
        %v1128 = vrot.slane %v244, 6
        %v1129 = vrot.slane %v1128, 4
        %v1130 = vrot.slane %v245, 6
        %v1131 = vsel %vm1057, %v1129, %v1130
        %v1132 = vrot.slane %v1130, 4
        %v1133 = vrot.slane %v246, 6
        %v1134 = vsel %vm1057, %v1132, %v1133
        %v1135 = vrot.slane %v247, 6
        %v1136 = vrot.slane %v1135, 4
        %v1137 = vrot.slane %v248, 6
        %v1138 = vsel %vm1057, %v1136, %v1137
        %v1139 = vrot.slane %v1137, 4
        %v1140 = vrot.slane %v249, 6
        %v1141 = vsel %vm1057, %v1139, %v1140
        %v1142 = vrot.slane %v250, 6
        %v1143 = vrot.slane %v1142, 4
        %v1144 = vrot.slane %v251, 6
        %v1145 = vsel %vm1057, %v1143, %v1144
        %v1146 = vrot.slane %v1144, 4
        %v1147 = vrot.slane %v252, 6
        %v1148 = vsel %vm1057, %v1146, %v1147
        %v1149 = vrot.slane %v253, 6
        %v1150 = vrot.slane %v1149, 4
        %v1151 = vrot.slane %v254, 6
        %v1152 = vsel %vm1057, %v1150, %v1151
        %v1153 = vrot.slane %v1151, 4
        %v1154 = vrot.slane %v255, 6
        %v1155 = vsel %vm1057, %v1153, %v1154
        %v1156 = vrot.slane %v256, 6
        %v1157 = vrot.slane %v1156, 4
        %v1158 = vrot.slane %v257, 6
        %v1159 = vsel %vm1057, %v1157, %v1158
        %v1160 = vrot.slane %v1158, 4
        %v1161 = vrot.slane %v258, 6
        %v1162 = vsel %vm1057, %v1160, %v1161
        %v1163 = vrot.slane %v259, 6
        %v1164 = vrot.slane %v1163, 4
        %v1165 = vrot.slane %v260, 6
        %v1166 = vsel %vm1057, %v1164, %v1165
        %v1167 = vrot.slane %v1165, 4
        %v1168 = vrot.slane %v261, 6
        %v1169 = vsel %vm1057, %v1167, %v1168
        %vm1170 = vsmask.f32 1280
        %vm1171 = vsmask.f32 5392
        %vm1172 = vmor %vm1170, %vm1171
        %v1173 = vrot.slane %v266, 6
        %v1174 = vrot.slane %v269, 7
        %v1175 = vor.u32 %v1173, %v1174
        %v1176 = vrot.slane %v1175, 4
        %v1177 = vrot.slane %v279, 6
        %v1178 = vrot.slane %v275, 7
        %v1179 = vor.u32 %v1177, %v1178
        %v1180 = vsel %vm1172, %v1176, %v1179
        %v1181 = vrot.slane %v1179, 4
        %v1182 = vrot.slane %v824, 6
        %v1183 = vrot.slane %v285, 7
        %v1184 = vor.u32 %v1182, %v1183
        %v1185 = vsel %vm1172, %v1181, %v1184
        %v1186 = vrot.slane %v290, 6
        %v1187 = vrot.slane %v293, 7
        %v1188 = vor.u32 %v1186, %v1187
        %v1189 = vrot.slane %v1188, 4
        %v1190 = vrot.slane %v303, 6
        %v1191 = vrot.slane %v299, 7
        %v1192 = vor.u32 %v1190, %v1191
        %v1193 = vsel %vm1172, %v1189, %v1192
        %v1194 = vrot.slane %v1192, 4
        %v1195 = vrot.slane %v839, 6
        %v1196 = vrot.slane %v309, 7
        %v1197 = vor.u32 %v1195, %v1196
        %v1198 = vsel %vm1172, %v1194, %v1197
        %v1199 = vrot.slane %v314, 6
        %v1200 = vrot.slane %v317, 7
        %v1201 = vor.u32 %v1199, %v1200
        %v1202 = vrot.slane %v1201, 4
        %v1203 = vrot.slane %v327, 6
        %v1204 = vrot.slane %v323, 7
        %v1205 = vor.u32 %v1203, %v1204
        %v1206 = vsel %vm1172, %v1202, %v1205
        %v1207 = vrot.slane %v1205, 4
        %v1208 = vrot.slane %v854, 6
        %v1209 = vrot.slane %v333, 7
        %v1210 = vor.u32 %v1208, %v1209
        %v1211 = vsel %vm1172, %v1207, %v1210
        %v1212 = vrot.slane %v338, 6
        %v1213 = vrot.slane %v341, 7
        %v1214 = vor.u32 %v1212, %v1213
        %v1215 = vrot.slane %v1214, 4
        %v1216 = vrot.slane %v351, 6
        %v1217 = vrot.slane %v347, 7
        %v1218 = vor.u32 %v1216, %v1217
        %v1219 = vsel %vm1172, %v1215, %v1218
        %v1220 = vrot.slane %v1218, 4
        %v1221 = vrot.slane %v869, 6
        %v1222 = vrot.slane %v357, 7
        %v1223 = vor.u32 %v1221, %v1222
        %v1224 = vsel %vm1172, %v1220, %v1223
        %v1225 = vrot.slane %v362, 6
        %v1226 = vrot.slane %v365, 7
        %v1227 = vor.u32 %v1225, %v1226
        %v1228 = vrot.slane %v1227, 4
        %v1229 = vrot.slane %v375, 6
        %v1230 = vrot.slane %v371, 7
        %v1231 = vor.u32 %v1229, %v1230
        %v1232 = vsel %vm1172, %v1228, %v1231
        %v1233 = vrot.slane %v1231, 4
        %v1234 = vrot.slane %v884, 6
        %v1235 = vrot.slane %v381, 7
        %v1236 = vor.u32 %v1234, %v1235
        %v1237 = vsel %vm1172, %v1233, %v1236
        %v1238 = vrot.slane %v386, 6
        %v1239 = vrot.slane %v389, 7
        %v1240 = vor.u32 %v1238, %v1239
        %v1241 = vrot.slane %v1240, 4
        %v1242 = vrot.slane %v399, 6
        %v1243 = vrot.slane %v395, 7
        %v1244 = vor.u32 %v1242, %v1243
        %v1245 = vsel %vm1172, %v1241, %v1244
        %v1246 = vrot.slane %v1244, 4
        %v1247 = vrot.slane %v899, 6
        %v1248 = vrot.slane %v405, 7
        %v1249 = vor.u32 %v1247, %v1248
        %v1250 = vsel %vm1172, %v1246, %v1249
        %v1251 = vrot.slane %v410, 6
        %v1252 = vrot.slane %v413, 7
        %v1253 = vor.u32 %v1251, %v1252
        %v1254 = vrot.slane %v1253, 4
        %v1255 = vrot.slane %v423, 6
        %v1256 = vrot.slane %v419, 7
        %v1257 = vor.u32 %v1255, %v1256
        %v1258 = vsel %vm1172, %v1254, %v1257
        %v1259 = vrot.slane %v1257, 4
        %v1260 = vrot.slane %v914, 6
        %v1261 = vrot.slane %v429, 7
        %v1262 = vor.u32 %v1260, %v1261
        %v1263 = vsel %vm1172, %v1259, %v1262
        %v1264 = vrot.slane %v434, 6
        %v1265 = vrot.slane %v437, 7
        %v1266 = vor.u32 %v1264, %v1265
        %v1267 = vrot.slane %v1266, 4
        %v1268 = vrot.slane %v447, 6
        %v1269 = vrot.slane %v443, 7
        %v1270 = vor.u32 %v1268, %v1269
        %v1271 = vsel %vm1172, %v1267, %v1270
        %v1272 = vrot.slane %v1270, 4
        %v1273 = vrot.slane %v929, 6
        %v1274 = vrot.slane %v453, 7
        %v1275 = vor.u32 %v1273, %v1274
        %v1276 = vsel %vm1172, %v1272, %v1275
        %v1277 = vrot.slane %v458, 6
        %v1278 = vrot.slane %v461, 7
        %v1279 = vor.u32 %v1277, %v1278
        %v1280 = vrot.slane %v1279, 4
        %v1281 = vrot.slane %v471, 6
        %v1282 = vrot.slane %v467, 7
        %v1283 = vor.u32 %v1281, %v1282
        %v1284 = vsel %vm1172, %v1280, %v1283
        %v1285 = vrot.slane %v1283, 4
        %v1286 = vrot.slane %v944, 6
        %v1287 = vrot.slane %v477, 7
        %v1288 = vor.u32 %v1286, %v1287
        %v1289 = vsel %vm1172, %v1285, %v1288
        %v1290 = vrot.slane %v482, 6
        %v1291 = vrot.slane %v485, 7
        %v1292 = vor.u32 %v1290, %v1291
        %v1293 = vrot.slane %v1292, 4
        %v1294 = vrot.slane %v495, 6
        %v1295 = vrot.slane %v491, 7
        %v1296 = vor.u32 %v1294, %v1295
        %v1297 = vsel %vm1172, %v1293, %v1296
        %v1298 = vrot.slane %v1296, 4
        %v1299 = vrot.slane %v959, 6
        %v1300 = vrot.slane %v501, 7
        %v1301 = vor.u32 %v1299, %v1300
        %v1302 = vsel %vm1172, %v1298, %v1301
        %v1303 = vrot.slane %v506, 6
        %v1304 = vrot.slane %v509, 7
        %v1305 = vor.u32 %v1303, %v1304
        %v1306 = vrot.slane %v1305, 4
        %v1307 = vrot.slane %v519, 6
        %v1308 = vrot.slane %v515, 7
        %v1309 = vor.u32 %v1307, %v1308
        %v1310 = vsel %vm1172, %v1306, %v1309
        %v1311 = vrot.slane %v1309, 4
        %v1312 = vrot.slane %v974, 6
        %v1313 = vrot.slane %v525, 7
        %v1314 = vor.u32 %v1312, %v1313
        %v1315 = vsel %vm1172, %v1311, %v1314
        %v1316 = vrot.slane %v530, 6
        %v1317 = vrot.slane %v533, 7
        %v1318 = vor.u32 %v1316, %v1317
        %v1319 = vrot.slane %v1318, 4
        %v1320 = vrot.slane %v543, 6
        %v1321 = vrot.slane %v539, 7
        %v1322 = vor.u32 %v1320, %v1321
        %v1323 = vsel %vm1172, %v1319, %v1322
        %v1324 = vrot.slane %v1322, 4
        %v1325 = vrot.slane %v989, 6
        %v1326 = vrot.slane %v549, 7
        %v1327 = vor.u32 %v1325, %v1326
        %v1328 = vsel %vm1172, %v1324, %v1327
        %v1329 = vrot.slane %v554, 6
        %v1330 = vrot.slane %v557, 7
        %v1331 = vor.u32 %v1329, %v1330
        %v1332 = vrot.slane %v1331, 4
        %v1333 = vrot.slane %v567, 6
        %v1334 = vrot.slane %v563, 7
        %v1335 = vor.u32 %v1333, %v1334
        %v1336 = vsel %vm1172, %v1332, %v1335
        %v1337 = vrot.slane %v1335, 4
        %v1338 = vrot.slane %v1004, 6
        %v1339 = vrot.slane %v573, 7
        %v1340 = vor.u32 %v1338, %v1339
        %v1341 = vsel %vm1172, %v1337, %v1340
        %v1342 = vrot.slane %v578, 6
        %v1343 = vrot.slane %v581, 7
        %v1344 = vor.u32 %v1342, %v1343
        %v1345 = vrot.slane %v1344, 4
        %v1346 = vrot.slane %v591, 6
        %v1347 = vrot.slane %v587, 7
        %v1348 = vor.u32 %v1346, %v1347
        %v1349 = vsel %vm1172, %v1345, %v1348
        %v1350 = vrot.slane %v1348, 4
        %v1351 = vrot.slane %v1019, 6
        %v1352 = vrot.slane %v597, 7
        %v1353 = vor.u32 %v1351, %v1352
        %v1354 = vsel %vm1172, %v1350, %v1353
        %v1355 = vrot.slane %v602, 6
        %v1356 = vrot.slane %v605, 7
        %v1357 = vor.u32 %v1355, %v1356
        %v1358 = vrot.slane %v1357, 4
        %v1359 = vrot.slane %v615, 6
        %v1360 = vrot.slane %v611, 7
        %v1361 = vor.u32 %v1359, %v1360
        %v1362 = vsel %vm1172, %v1358, %v1361
        %v1363 = vrot.slane %v1361, 4
        %v1364 = vrot.slane %v1034, 6
        %v1365 = vrot.slane %v621, 7
        %v1366 = vor.u32 %v1364, %v1365
        %v1367 = vsel %vm1172, %v1363, %v1366
        %v1368 = vrot.slane %v626, 6
        %v1369 = vrot.slane %v629, 7
        %v1370 = vor.u32 %v1368, %v1369
        %v1371 = vrot.slane %v1370, 4
        %v1372 = vrot.slane %v639, 6
        %v1373 = vrot.slane %v635, 7
        %v1374 = vor.u32 %v1372, %v1373
        %v1375 = vsel %vm1172, %v1371, %v1374
        %v1376 = vrot.slane %v1374, 4
        %v1377 = vrot.slane %v1049, 6
        %v1378 = vrot.slane %v645, 7
        %v1379 = vor.u32 %v1377, %v1378
        %v1380 = vsel %vm1172, %v1376, %v1379
        %vm1381 = vcmask 1040384
        %vm1382 = vcmask 1044484
        %vm1383 = vmor %vm1381, %vm1382
        %v1384 = vrot.slane %v214, 7
        %v1385 = vrot.slane %v1384, 4
        %v1386 = vrot.slane %v215, 7
        %v1387 = vsel %vm1383, %v1385, %v1386
        %v1388 = vrot.slane %v1386, 4
        %v1389 = vrot.slane %v216, 7
        %v1390 = vsel %vm1383, %v1388, %v1389
        %v1391 = vrot.slane %v217, 7
        %v1392 = vrot.slane %v1391, 4
        %v1393 = vrot.slane %v218, 7
        %v1394 = vsel %vm1383, %v1392, %v1393
        %v1395 = vrot.slane %v1393, 4
        %v1396 = vrot.slane %v219, 7
        %v1397 = vsel %vm1383, %v1395, %v1396
        %v1398 = vrot.slane %v220, 7
        %v1399 = vrot.slane %v1398, 4
        %v1400 = vrot.slane %v221, 7
        %v1401 = vsel %vm1383, %v1399, %v1400
        %v1402 = vrot.slane %v1400, 4
        %v1403 = vrot.slane %v222, 7
        %v1404 = vsel %vm1383, %v1402, %v1403
        %v1405 = vrot.slane %v223, 7
        %v1406 = vrot.slane %v1405, 4
        %v1407 = vrot.slane %v224, 7
        %v1408 = vsel %vm1383, %v1406, %v1407
        %v1409 = vrot.slane %v1407, 4
        %v1410 = vrot.slane %v225, 7
        %v1411 = vsel %vm1383, %v1409, %v1410
        %v1412 = vrot.slane %v226, 7
        %v1413 = vrot.slane %v1412, 4
        %v1414 = vrot.slane %v227, 7
        %v1415 = vsel %vm1383, %v1413, %v1414
        %v1416 = vrot.slane %v1414, 4
        %v1417 = vrot.slane %v228, 7
        %v1418 = vsel %vm1383, %v1416, %v1417
        %v1419 = vrot.slane %v229, 7
        %v1420 = vrot.slane %v1419, 4
        %v1421 = vrot.slane %v230, 7
        %v1422 = vsel %vm1383, %v1420, %v1421
        %v1423 = vrot.slane %v1421, 4
        %v1424 = vrot.slane %v231, 7
        %v1425 = vsel %vm1383, %v1423, %v1424
        %v1426 = vrot.slane %v232, 7
        %v1427 = vrot.slane %v1426, 4
        %v1428 = vrot.slane %v233, 7
        %v1429 = vsel %vm1383, %v1427, %v1428
        %v1430 = vrot.slane %v1428, 4
        %v1431 = vrot.slane %v234, 7
        %v1432 = vsel %vm1383, %v1430, %v1431
        %v1433 = vrot.slane %v235, 7
        %v1434 = vrot.slane %v1433, 4
        %v1435 = vrot.slane %v236, 7
        %v1436 = vsel %vm1383, %v1434, %v1435
        %v1437 = vrot.slane %v1435, 4
        %v1438 = vrot.slane %v237, 7
        %v1439 = vsel %vm1383, %v1437, %v1438
        %v1440 = vrot.slane %v238, 7
        %v1441 = vrot.slane %v1440, 4
        %v1442 = vrot.slane %v239, 7
        %v1443 = vsel %vm1383, %v1441, %v1442
        %v1444 = vrot.slane %v1442, 4
        %v1445 = vrot.slane %v240, 7
        %v1446 = vsel %vm1383, %v1444, %v1445
        %v1447 = vrot.slane %v241, 7
        %v1448 = vrot.slane %v1447, 4
        %v1449 = vrot.slane %v242, 7
        %v1450 = vsel %vm1383, %v1448, %v1449
        %v1451 = vrot.slane %v1449, 4
        %v1452 = vrot.slane %v243, 7
        %v1453 = vsel %vm1383, %v1451, %v1452
        %v1454 = vrot.slane %v244, 7
        %v1455 = vrot.slane %v1454, 4
        %v1456 = vrot.slane %v245, 7
        %v1457 = vsel %vm1383, %v1455, %v1456
        %v1458 = vrot.slane %v1456, 4
        %v1459 = vrot.slane %v246, 7
        %v1460 = vsel %vm1383, %v1458, %v1459
        %v1461 = vrot.slane %v247, 7
        %v1462 = vrot.slane %v1461, 4
        %v1463 = vrot.slane %v248, 7
        %v1464 = vsel %vm1383, %v1462, %v1463
        %v1465 = vrot.slane %v1463, 4
        %v1466 = vrot.slane %v249, 7
        %v1467 = vsel %vm1383, %v1465, %v1466
        %v1468 = vrot.slane %v250, 7
        %v1469 = vrot.slane %v1468, 4
        %v1470 = vrot.slane %v251, 7
        %v1471 = vsel %vm1383, %v1469, %v1470
        %v1472 = vrot.slane %v1470, 4
        %v1473 = vrot.slane %v252, 7
        %v1474 = vsel %vm1383, %v1472, %v1473
        %v1475 = vrot.slane %v253, 7
        %v1476 = vrot.slane %v1475, 4
        %v1477 = vrot.slane %v254, 7
        %v1478 = vsel %vm1383, %v1476, %v1477
        %v1479 = vrot.slane %v1477, 4
        %v1480 = vrot.slane %v255, 7
        %v1481 = vsel %vm1383, %v1479, %v1480
        %v1482 = vrot.slane %v256, 7
        %v1483 = vrot.slane %v1482, 4
        %v1484 = vrot.slane %v257, 7
        %v1485 = vsel %vm1383, %v1483, %v1484
        %v1486 = vrot.slane %v1484, 4
        %v1487 = vrot.slane %v258, 7
        %v1488 = vsel %vm1383, %v1486, %v1487
        %v1489 = vrot.slane %v259, 7
        %v1490 = vrot.slane %v1489, 4
        %v1491 = vrot.slane %v260, 7
        %v1492 = vsel %vm1383, %v1490, %v1491
        %v1493 = vrot.slane %v1491, 4
        %v1494 = vrot.slane %v261, 7
        %v1495 = vsel %vm1383, %v1493, %v1494
        %vm1496 = vsmask.f32 256
        %vm1497 = vsmask.f32 4368
        %vm1498 = vmor %vm1496, %vm1497
        %v1499 = vrot.slane %v266, 7
        %v1500 = vrot.slane %v1499, 4
        %v1501 = vrot.slane %v279, 7
        %v1502 = vor.u32 %v1501, %v275
        %v1503 = vsel %vm1498, %v1500, %v1502
        %v1504 = vrot.slane %v1501, 4
        %v1505 = vrot.slane %v824, 7
        %v1506 = vor.u32 %v1505, %v285
        %v1507 = vsel %vm1498, %v1504, %v1506
        %v1508 = vrot.slane %v290, 7
        %v1509 = vrot.slane %v1508, 4
        %v1510 = vrot.slane %v303, 7
        %v1511 = vor.u32 %v1510, %v299
        %v1512 = vsel %vm1498, %v1509, %v1511
        %v1513 = vrot.slane %v1510, 4
        %v1514 = vrot.slane %v839, 7
        %v1515 = vor.u32 %v1514, %v309
        %v1516 = vsel %vm1498, %v1513, %v1515
        %v1517 = vrot.slane %v314, 7
        %v1518 = vrot.slane %v1517, 4
        %v1519 = vrot.slane %v327, 7
        %v1520 = vor.u32 %v1519, %v323
        %v1521 = vsel %vm1498, %v1518, %v1520
        %v1522 = vrot.slane %v1519, 4
        %v1523 = vrot.slane %v854, 7
        %v1524 = vor.u32 %v1523, %v333
        %v1525 = vsel %vm1498, %v1522, %v1524
        %v1526 = vrot.slane %v338, 7
        %v1527 = vrot.slane %v1526, 4
        %v1528 = vrot.slane %v351, 7
        %v1529 = vor.u32 %v1528, %v347
        %v1530 = vsel %vm1498, %v1527, %v1529
        %v1531 = vrot.slane %v1528, 4
        %v1532 = vrot.slane %v869, 7
        %v1533 = vor.u32 %v1532, %v357
        %v1534 = vsel %vm1498, %v1531, %v1533
        %v1535 = vrot.slane %v362, 7
        %v1536 = vrot.slane %v1535, 4
        %v1537 = vrot.slane %v375, 7
        %v1538 = vor.u32 %v1537, %v371
        %v1539 = vsel %vm1498, %v1536, %v1538
        %v1540 = vrot.slane %v1537, 4
        %v1541 = vrot.slane %v884, 7
        %v1542 = vor.u32 %v1541, %v381
        %v1543 = vsel %vm1498, %v1540, %v1542
        %v1544 = vrot.slane %v386, 7
        %v1545 = vrot.slane %v1544, 4
        %v1546 = vrot.slane %v399, 7
        %v1547 = vor.u32 %v1546, %v395
        %v1548 = vsel %vm1498, %v1545, %v1547
        %v1549 = vrot.slane %v1546, 4
        %v1550 = vrot.slane %v899, 7
        %v1551 = vor.u32 %v1550, %v405
        %v1552 = vsel %vm1498, %v1549, %v1551
        %v1553 = vrot.slane %v410, 7
        %v1554 = vrot.slane %v1553, 4
        %v1555 = vrot.slane %v423, 7
        %v1556 = vor.u32 %v1555, %v419
        %v1557 = vsel %vm1498, %v1554, %v1556
        %v1558 = vrot.slane %v1555, 4
        %v1559 = vrot.slane %v914, 7
        %v1560 = vor.u32 %v1559, %v429
        %v1561 = vsel %vm1498, %v1558, %v1560
        %v1562 = vrot.slane %v434, 7
        %v1563 = vrot.slane %v1562, 4
        %v1564 = vrot.slane %v447, 7
        %v1565 = vor.u32 %v1564, %v443
        %v1566 = vsel %vm1498, %v1563, %v1565
        %v1567 = vrot.slane %v1564, 4
        %v1568 = vrot.slane %v929, 7
        %v1569 = vor.u32 %v1568, %v453
        %v1570 = vsel %vm1498, %v1567, %v1569
        %v1571 = vrot.slane %v458, 7
        %v1572 = vrot.slane %v1571, 4
        %v1573 = vrot.slane %v471, 7
        %v1574 = vor.u32 %v1573, %v467
        %v1575 = vsel %vm1498, %v1572, %v1574
        %v1576 = vrot.slane %v1573, 4
        %v1577 = vrot.slane %v944, 7
        %v1578 = vor.u32 %v1577, %v477
        %v1579 = vsel %vm1498, %v1576, %v1578
        %v1580 = vrot.slane %v482, 7
        %v1581 = vrot.slane %v1580, 4
        %v1582 = vrot.slane %v495, 7
        %v1583 = vor.u32 %v1582, %v491
        %v1584 = vsel %vm1498, %v1581, %v1583
        %v1585 = vrot.slane %v1582, 4
        %v1586 = vrot.slane %v959, 7
        %v1587 = vor.u32 %v1586, %v501
        %v1588 = vsel %vm1498, %v1585, %v1587
        %v1589 = vrot.slane %v506, 7
        %v1590 = vrot.slane %v1589, 4
        %v1591 = vrot.slane %v519, 7
        %v1592 = vor.u32 %v1591, %v515
        %v1593 = vsel %vm1498, %v1590, %v1592
        %v1594 = vrot.slane %v1591, 4
        %v1595 = vrot.slane %v974, 7
        %v1596 = vor.u32 %v1595, %v525
        %v1597 = vsel %vm1498, %v1594, %v1596
        %v1598 = vrot.slane %v530, 7
        %v1599 = vrot.slane %v1598, 4
        %v1600 = vrot.slane %v543, 7
        %v1601 = vor.u32 %v1600, %v539
        %v1602 = vsel %vm1498, %v1599, %v1601
        %v1603 = vrot.slane %v1600, 4
        %v1604 = vrot.slane %v989, 7
        %v1605 = vor.u32 %v1604, %v549
        %v1606 = vsel %vm1498, %v1603, %v1605
        %v1607 = vrot.slane %v554, 7
        %v1608 = vrot.slane %v1607, 4
        %v1609 = vrot.slane %v567, 7
        %v1610 = vor.u32 %v1609, %v563
        %v1611 = vsel %vm1498, %v1608, %v1610
        %v1612 = vrot.slane %v1609, 4
        %v1613 = vrot.slane %v1004, 7
        %v1614 = vor.u32 %v1613, %v573
        %v1615 = vsel %vm1498, %v1612, %v1614
        %v1616 = vrot.slane %v578, 7
        %v1617 = vrot.slane %v1616, 4
        %v1618 = vrot.slane %v591, 7
        %v1619 = vor.u32 %v1618, %v587
        %v1620 = vsel %vm1498, %v1617, %v1619
        %v1621 = vrot.slane %v1618, 4
        %v1622 = vrot.slane %v1019, 7
        %v1623 = vor.u32 %v1622, %v597
        %v1624 = vsel %vm1498, %v1621, %v1623
        %v1625 = vrot.slane %v602, 7
        %v1626 = vrot.slane %v1625, 4
        %v1627 = vrot.slane %v615, 7
        %v1628 = vor.u32 %v1627, %v611
        %v1629 = vsel %vm1498, %v1626, %v1628
        %v1630 = vrot.slane %v1627, 4
        %v1631 = vrot.slane %v1034, 7
        %v1632 = vor.u32 %v1631, %v621
        %v1633 = vsel %vm1498, %v1630, %v1632
        %v1634 = vrot.slane %v626, 7
        %v1635 = vrot.slane %v1634, 4
        %v1636 = vrot.slane %v639, 7
        %v1637 = vor.u32 %v1636, %v635
        %v1638 = vsel %vm1498, %v1635, %v1637
        %v1639 = vrot.slane %v1636, 4
        %v1640 = vrot.slane %v1049, 7
        %v1641 = vor.u32 %v1640, %v645
        %v1642 = vsel %vm1498, %v1639, %v1641
        %v1643 = vunpack.c.l.b16 %v214
        %v1644 = vunpack.c.l.b16 %v215
        %v1645 = vunpack.c.l.b16 %v217
        %v1646 = vunpack.c.l.b16 %v218
        %v1647 = vunpack.c.l.b16 %v220
        %v1648 = vunpack.c.l.b16 %v221
        %v1649 = vunpack.c.l.b16 %v223
        %v1650 = vunpack.c.l.b16 %v224
        %v1651 = vunpack.c.l.b16 %v226
        %v1652 = vunpack.c.l.b16 %v227
        %v1653 = vunpack.c.l.b16 %v229
        %v1654 = vunpack.c.l.b16 %v230
        %v1655 = vunpack.c.l.b16 %v232
        %v1656 = vunpack.c.l.b16 %v233
        %v1657 = vunpack.c.l.b16 %v235
        %v1658 = vunpack.c.l.b16 %v236
        %v1659 = vunpack.c.l.b16 %v238
        %v1660 = vunpack.c.l.b16 %v239
        %v1661 = vunpack.c.l.b16 %v241
        %v1662 = vunpack.c.l.b16 %v242
        %v1663 = vunpack.c.l.b16 %v244
        %v1664 = vunpack.c.l.b16 %v245
        %v1665 = vunpack.c.l.b16 %v247
        %v1666 = vunpack.c.l.b16 %v248
        %v1667 = vunpack.c.l.b16 %v250
        %v1668 = vunpack.c.l.b16 %v251
        %v1669 = vunpack.c.l.b16 %v253
        %v1670 = vunpack.c.l.b16 %v254
        %v1671 = vunpack.c.l.b16 %v256
        %v1672 = vunpack.c.l.b16 %v257
        %v1673 = vunpack.c.l.b16 %v259
        %v1674 = vunpack.c.l.b16 %v260
        %v1675 = vpack.c.b16 %v1644, %v1643
        %v1676 = vpack.c.b16 %v1646, %v1645
        %v1677 = vpack.c.b16 %v1648, %v1647
        %v1678 = vpack.c.b16 %v1650, %v1649
        %v1679 = vpack.c.b16 %v1652, %v1651
        %v1680 = vpack.c.b16 %v1654, %v1653
        %v1681 = vpack.c.b16 %v1656, %v1655
        %v1682 = vpack.c.b16 %v1658, %v1657
        %v1683 = vpack.c.b16 %v1660, %v1659
        %v1684 = vpack.c.b16 %v1662, %v1661
        %v1685 = vpack.c.b16 %v1664, %v1663
        %v1686 = vpack.c.b16 %v1666, %v1665
        %v1687 = vpack.c.b16 %v1668, %v1667
        %v1688 = vpack.c.b16 %v1670, %v1669
        %v1689 = vpack.c.b16 %v1672, %v1671
        %v1690 = vpack.c.b16 %v1674, %v1673
        %v1691 = vunpack.c.l.b16 %v278
        %v1692 = vunpack.c.l.b16 %v288
        %v1693 = vunpack.c.l.b16 %v302
        %v1694 = vunpack.c.l.b16 %v312
        %v1695 = vunpack.c.l.b16 %v326
        %v1696 = vunpack.c.l.b16 %v336
        %v1697 = vunpack.c.l.b16 %v350
        %v1698 = vunpack.c.l.b16 %v360
        %v1699 = vunpack.c.l.b16 %v374
        %v1700 = vunpack.c.l.b16 %v384
        %v1701 = vunpack.c.l.b16 %v398
        %v1702 = vunpack.c.l.b16 %v408
        %v1703 = vunpack.c.l.b16 %v422
        %v1704 = vunpack.c.l.b16 %v432
        %v1705 = vunpack.c.l.b16 %v446
        %v1706 = vunpack.c.l.b16 %v456
        %v1707 = vunpack.c.l.b16 %v470
        %v1708 = vunpack.c.l.b16 %v480
        %v1709 = vunpack.c.l.b16 %v494
        %v1710 = vunpack.c.l.b16 %v504
        %v1711 = vunpack.c.l.b16 %v518
        %v1712 = vunpack.c.l.b16 %v528
        %v1713 = vunpack.c.l.b16 %v542
        %v1714 = vunpack.c.l.b16 %v552
        %v1715 = vunpack.c.l.b16 %v566
        %v1716 = vunpack.c.l.b16 %v576
        %v1717 = vunpack.c.l.b16 %v590
        %v1718 = vunpack.c.l.b16 %v600
        %v1719 = vunpack.c.l.b16 %v614
        %v1720 = vunpack.c.l.b16 %v624
        %v1721 = vunpack.c.l.b16 %v638
        %v1722 = vunpack.c.l.b16 %v648
        %v1723 = vpack.c.b16 %v1692, %v1691
        %v1724 = vpack.c.b16 %v1694, %v1693
        %v1725 = vpack.c.b16 %v1696, %v1695
        %v1726 = vpack.c.b16 %v1698, %v1697
        %v1727 = vpack.c.b16 %v1700, %v1699
        %v1728 = vpack.c.b16 %v1702, %v1701
        %v1729 = vpack.c.b16 %v1704, %v1703
        %v1730 = vpack.c.b16 %v1706, %v1705
        %v1731 = vpack.c.b16 %v1708, %v1707
        %v1732 = vpack.c.b16 %v1710, %v1709
        %v1733 = vpack.c.b16 %v1712, %v1711
        %v1734 = vpack.c.b16 %v1714, %v1713
        %v1735 = vpack.c.b16 %v1716, %v1715
        %v1736 = vpack.c.b16 %v1718, %v1717
        %v1737 = vpack.c.b16 %v1720, %v1719
        %v1738 = vpack.c.b16 %v1722, %v1721
        %1739 = vrot.lane.b32.xlu0 %v1723, 16
        %v1740 = vpop.permute.xlu0 %1739
        %1741 = vrot.lane.b32.xlu0 %v1724, 16
        %v1742 = vpop.permute.xlu0 %1741
        %1743 = vrot.lane.b32.xlu0 %v1725, 16
        %v1744 = vpop.permute.xlu0 %1743
        %1745 = vrot.lane.b32.xlu0 %v1726, 16
        %v1746 = vpop.permute.xlu0 %1745
        %1747 = vrot.lane.b32.xlu0 %v1727, 16
        %v1748 = vpop.permute.xlu0 %1747
        %1749 = vrot.lane.b32.xlu0 %v1728, 16
        %v1750 = vpop.permute.xlu0 %1749
        %1751 = vrot.lane.b32.xlu0 %v1729, 16
        %v1752 = vpop.permute.xlu0 %1751
        %1753 = vrot.lane.b32.xlu0 %v1730, 16
        %v1754 = vpop.permute.xlu0 %1753
        %1755 = vrot.lane.b32.xlu0 %v1731, 16
        %v1756 = vpop.permute.xlu0 %1755
        %1757 = vrot.lane.b32.xlu0 %v1732, 16
        %v1758 = vpop.permute.xlu0 %1757
        %1759 = vrot.lane.b32.xlu0 %v1733, 16
        %v1760 = vpop.permute.xlu0 %1759
        %1761 = vrot.lane.b32.xlu0 %v1734, 16
        %v1762 = vpop.permute.xlu0 %1761
        %1763 = vrot.lane.b32.xlu0 %v1735, 16
        %v1764 = vpop.permute.xlu0 %1763
        %1765 = vrot.lane.b32.xlu0 %v1736, 16
        %v1766 = vpop.permute.xlu0 %1765
        %1767 = vrot.lane.b32.xlu0 %v1737, 16
        %v1768 = vpop.permute.xlu0 %1767
        %1769 = vrot.lane.b32.xlu0 %v1738, 16
        %v1770 = vpop.permute.xlu0 %1769
        %v1771 = vunpack.c.l.b16 %v703
        %v1772 = vunpack.c.l.b16 %v706
        %v1773 = vunpack.c.l.b16 %v710
        %v1774 = vunpack.c.l.b16 %v713
        %v1775 = vunpack.c.l.b16 %v717
        %v1776 = vunpack.c.l.b16 %v720
        %v1777 = vunpack.c.l.b16 %v724
        %v1778 = vunpack.c.l.b16 %v727
        %v1779 = vunpack.c.l.b16 %v731
        %v1780 = vunpack.c.l.b16 %v734
        %v1781 = vunpack.c.l.b16 %v738
        %v1782 = vunpack.c.l.b16 %v741
        %v1783 = vunpack.c.l.b16 %v745
        %v1784 = vunpack.c.l.b16 %v748
        %v1785 = vunpack.c.l.b16 %v752
        %v1786 = vunpack.c.l.b16 %v755
        %v1787 = vunpack.c.l.b16 %v759
        %v1788 = vunpack.c.l.b16 %v762
        %v1789 = vunpack.c.l.b16 %v766
        %v1790 = vunpack.c.l.b16 %v769
        %v1791 = vunpack.c.l.b16 %v773
        %v1792 = vunpack.c.l.b16 %v776
        %v1793 = vunpack.c.l.b16 %v780
        %v1794 = vunpack.c.l.b16 %v783
        %v1795 = vunpack.c.l.b16 %v787
        %v1796 = vunpack.c.l.b16 %v790
        %v1797 = vunpack.c.l.b16 %v794
        %v1798 = vunpack.c.l.b16 %v797
        %v1799 = vunpack.c.l.b16 %v801
        %v1800 = vunpack.c.l.b16 %v804
        %v1801 = vunpack.c.l.b16 %v808
        %v1802 = vunpack.c.l.b16 %v811
        %v1803 = vpack.c.b16 %v1772, %v1771
        %v1804 = vpack.c.b16 %v1774, %v1773
        %v1805 = vpack.c.b16 %v1776, %v1775
        %v1806 = vpack.c.b16 %v1778, %v1777
        %v1807 = vpack.c.b16 %v1780, %v1779
        %v1808 = vpack.c.b16 %v1782, %v1781
        %v1809 = vpack.c.b16 %v1784, %v1783
        %v1810 = vpack.c.b16 %v1786, %v1785
        %v1811 = vpack.c.b16 %v1788, %v1787
        %v1812 = vpack.c.b16 %v1790, %v1789
        %v1813 = vpack.c.b16 %v1792, %v1791
        %v1814 = vpack.c.b16 %v1794, %v1793
        %v1815 = vpack.c.b16 %v1796, %v1795
        %v1816 = vpack.c.b16 %v1798, %v1797
        %v1817 = vpack.c.b16 %v1800, %v1799
        %v1818 = vpack.c.b16 %v1802, %v1801
        %1819 = vrot.lane.b32.xlu0 %v1803, 32
        %v1820 = vpop.permute.xlu0 %1819
        %1821 = vrot.lane.b32.xlu0 %v1804, 32
        %v1822 = vpop.permute.xlu0 %1821
        %1823 = vrot.lane.b32.xlu0 %v1805, 32
        %v1824 = vpop.permute.xlu0 %1823
        %1825 = vrot.lane.b32.xlu0 %v1806, 32
        %v1826 = vpop.permute.xlu0 %1825
        %1827 = vrot.lane.b32.xlu0 %v1807, 32
        %v1828 = vpop.permute.xlu0 %1827
        %1829 = vrot.lane.b32.xlu0 %v1808, 32
        %v1830 = vpop.permute.xlu0 %1829
        %1831 = vrot.lane.b32.xlu0 %v1809, 32
        %v1832 = vpop.permute.xlu0 %1831
        %1833 = vrot.lane.b32.xlu0 %v1810, 32
        %v1834 = vpop.permute.xlu0 %1833
        %1835 = vrot.lane.b32.xlu0 %v1811, 32
        %v1836 = vpop.permute.xlu0 %1835
        %1837 = vrot.lane.b32.xlu0 %v1812, 32
        %v1838 = vpop.permute.xlu0 %1837
        %1839 = vrot.lane.b32.xlu0 %v1813, 32
        %v1840 = vpop.permute.xlu0 %1839
        %1841 = vrot.lane.b32.xlu0 %v1814, 32
        %v1842 = vpop.permute.xlu0 %1841
        %1843 = vrot.lane.b32.xlu0 %v1815, 32
        %v1844 = vpop.permute.xlu0 %1843
        %1845 = vrot.lane.b32.xlu0 %v1816, 32
        %v1846 = vpop.permute.xlu0 %1845
        %1847 = vrot.lane.b32.xlu0 %v1817, 32
        %v1848 = vpop.permute.xlu0 %1847
        %1849 = vrot.lane.b32.xlu0 %v1818, 32
        %v1850 = vpop.permute.xlu0 %1849
        %v1851 = vunpack.c.l.b16 %v822
        %v1852 = vunpack.c.l.b16 %v829
        %v1853 = vunpack.c.l.b16 %v837
        %v1854 = vunpack.c.l.b16 %v844
        %v1855 = vunpack.c.l.b16 %v852
        %v1856 = vunpack.c.l.b16 %v859
        %v1857 = vunpack.c.l.b16 %v867
        %v1858 = vunpack.c.l.b16 %v874
        %v1859 = vunpack.c.l.b16 %v882
        %v1860 = vunpack.c.l.b16 %v889
        %v1861 = vunpack.c.l.b16 %v897
        %v1862 = vunpack.c.l.b16 %v904
        %v1863 = vunpack.c.l.b16 %v912
        %v1864 = vunpack.c.l.b16 %v919
        %v1865 = vunpack.c.l.b16 %v927
        %v1866 = vunpack.c.l.b16 %v934
        %v1867 = vunpack.c.l.b16 %v942
        %v1868 = vunpack.c.l.b16 %v949
        %v1869 = vunpack.c.l.b16 %v957
        %v1870 = vunpack.c.l.b16 %v964
        %v1871 = vunpack.c.l.b16 %v972
        %v1872 = vunpack.c.l.b16 %v979
        %v1873 = vunpack.c.l.b16 %v987
        %v1874 = vunpack.c.l.b16 %v994
        %v1875 = vunpack.c.l.b16 %v1002
        %v1876 = vunpack.c.l.b16 %v1009
        %v1877 = vunpack.c.l.b16 %v1017
        %v1878 = vunpack.c.l.b16 %v1024
        %v1879 = vunpack.c.l.b16 %v1032
        %v1880 = vunpack.c.l.b16 %v1039
        %v1881 = vunpack.c.l.b16 %v1047
        %v1882 = vunpack.c.l.b16 %v1054
        %v1883 = vpack.c.b16 %v1852, %v1851
        %v1884 = vpack.c.b16 %v1854, %v1853
        %v1885 = vpack.c.b16 %v1856, %v1855
        %v1886 = vpack.c.b16 %v1858, %v1857
        %v1887 = vpack.c.b16 %v1860, %v1859
        %v1888 = vpack.c.b16 %v1862, %v1861
        %v1889 = vpack.c.b16 %v1864, %v1863
        %v1890 = vpack.c.b16 %v1866, %v1865
        %v1891 = vpack.c.b16 %v1868, %v1867
        %v1892 = vpack.c.b16 %v1870, %v1869
        %v1893 = vpack.c.b16 %v1872, %v1871
        %v1894 = vpack.c.b16 %v1874, %v1873
        %v1895 = vpack.c.b16 %v1876, %v1875
        %v1896 = vpack.c.b16 %v1878, %v1877
        %v1897 = vpack.c.b16 %v1880, %v1879
        %v1898 = vpack.c.b16 %v1882, %v1881
        %1899 = vrot.lane.b32.xlu0 %v1883, 48
        %v1900 = vpop.permute.xlu0 %1899
        %1901 = vrot.lane.b32.xlu0 %v1884, 48
        %v1902 = vpop.permute.xlu0 %1901
        %1903 = vrot.lane.b32.xlu0 %v1885, 48
        %v1904 = vpop.permute.xlu0 %1903
        %1905 = vrot.lane.b32.xlu0 %v1886, 48
        %v1906 = vpop.permute.xlu0 %1905
        %1907 = vrot.lane.b32.xlu0 %v1887, 48
        %v1908 = vpop.permute.xlu0 %1907
        %1909 = vrot.lane.b32.xlu0 %v1888, 48
        %v1910 = vpop.permute.xlu0 %1909
        %1911 = vrot.lane.b32.xlu0 %v1889, 48
        %v1912 = vpop.permute.xlu0 %1911
        %1913 = vrot.lane.b32.xlu0 %v1890, 48
        %v1914 = vpop.permute.xlu0 %1913
        %1915 = vrot.lane.b32.xlu0 %v1891, 48
        %v1916 = vpop.permute.xlu0 %1915
        %1917 = vrot.lane.b32.xlu0 %v1892, 48
        %v1918 = vpop.permute.xlu0 %1917
        %1919 = vrot.lane.b32.xlu0 %v1893, 48
        %v1920 = vpop.permute.xlu0 %1919
        %1921 = vrot.lane.b32.xlu0 %v1894, 48
        %v1922 = vpop.permute.xlu0 %1921
        %1923 = vrot.lane.b32.xlu0 %v1895, 48
        %v1924 = vpop.permute.xlu0 %1923
        %1925 = vrot.lane.b32.xlu0 %v1896, 48
        %v1926 = vpop.permute.xlu0 %1925
        %1927 = vrot.lane.b32.xlu0 %v1897, 48
        %v1928 = vpop.permute.xlu0 %1927
        %1929 = vrot.lane.b32.xlu0 %v1898, 48
        %v1930 = vpop.permute.xlu0 %1929
        %v1931 = vunpack.c.l.b16 %v1061
        %v1932 = vunpack.c.l.b16 %v1064
        %v1933 = vunpack.c.l.b16 %v1068
        %v1934 = vunpack.c.l.b16 %v1071
        %v1935 = vunpack.c.l.b16 %v1075
        %v1936 = vunpack.c.l.b16 %v1078
        %v1937 = vunpack.c.l.b16 %v1082
        %v1938 = vunpack.c.l.b16 %v1085
        %v1939 = vunpack.c.l.b16 %v1089
        %v1940 = vunpack.c.l.b16 %v1092
        %v1941 = vunpack.c.l.b16 %v1096
        %v1942 = vunpack.c.l.b16 %v1099
        %v1943 = vunpack.c.l.b16 %v1103
        %v1944 = vunpack.c.l.b16 %v1106
        %v1945 = vunpack.c.l.b16 %v1110
        %v1946 = vunpack.c.l.b16 %v1113
        %v1947 = vunpack.c.l.b16 %v1117
        %v1948 = vunpack.c.l.b16 %v1120
        %v1949 = vunpack.c.l.b16 %v1124
        %v1950 = vunpack.c.l.b16 %v1127
        %v1951 = vunpack.c.l.b16 %v1131
        %v1952 = vunpack.c.l.b16 %v1134
        %v1953 = vunpack.c.l.b16 %v1138
        %v1954 = vunpack.c.l.b16 %v1141
        %v1955 = vunpack.c.l.b16 %v1145
        %v1956 = vunpack.c.l.b16 %v1148
        %v1957 = vunpack.c.l.b16 %v1152
        %v1958 = vunpack.c.l.b16 %v1155
        %v1959 = vunpack.c.l.b16 %v1159
        %v1960 = vunpack.c.l.b16 %v1162
        %v1961 = vunpack.c.l.b16 %v1166
        %v1962 = vunpack.c.l.b16 %v1169
        %v1963 = vpack.c.b16 %v1932, %v1931
        %v1964 = vpack.c.b16 %v1934, %v1933
        %v1965 = vpack.c.b16 %v1936, %v1935
        %v1966 = vpack.c.b16 %v1938, %v1937
        %v1967 = vpack.c.b16 %v1940, %v1939
        %v1968 = vpack.c.b16 %v1942, %v1941
        %v1969 = vpack.c.b16 %v1944, %v1943
        %v1970 = vpack.c.b16 %v1946, %v1945
        %v1971 = vpack.c.b16 %v1948, %v1947
        %v1972 = vpack.c.b16 %v1950, %v1949
        %v1973 = vpack.c.b16 %v1952, %v1951
        %v1974 = vpack.c.b16 %v1954, %v1953
        %v1975 = vpack.c.b16 %v1956, %v1955
        %v1976 = vpack.c.b16 %v1958, %v1957
        %v1977 = vpack.c.b16 %v1960, %v1959
        %v1978 = vpack.c.b16 %v1962, %v1961
        %1979 = vrot.lane.b32.xlu0 %v1963, 64
        %v1980 = vpop.permute.xlu0 %1979
        %1981 = vrot.lane.b32.xlu0 %v1964, 64
        %v1982 = vpop.permute.xlu0 %1981
        %1983 = vrot.lane.b32.xlu0 %v1965, 64
        %v1984 = vpop.permute.xlu0 %1983
        %1985 = vrot.lane.b32.xlu0 %v1966, 64
        %v1986 = vpop.permute.xlu0 %1985
        %1987 = vrot.lane.b32.xlu0 %v1967, 64
        %v1988 = vpop.permute.xlu0 %1987
        %1989 = vrot.lane.b32.xlu0 %v1968, 64
        %v1990 = vpop.permute.xlu0 %1989
        %1991 = vrot.lane.b32.xlu0 %v1969, 64
        %v1992 = vpop.permute.xlu0 %1991
        %1993 = vrot.lane.b32.xlu0 %v1970, 64
        %v1994 = vpop.permute.xlu0 %1993
        %1995 = vrot.lane.b32.xlu0 %v1971, 64
        %v1996 = vpop.permute.xlu0 %1995
        %1997 = vrot.lane.b32.xlu0 %v1972, 64
        %v1998 = vpop.permute.xlu0 %1997
        %1999 = vrot.lane.b32.xlu0 %v1973, 64
        %v2000 = vpop.permute.xlu0 %1999
        %2001 = vrot.lane.b32.xlu0 %v1974, 64
        %v2002 = vpop.permute.xlu0 %2001
        %2003 = vrot.lane.b32.xlu0 %v1975, 64
        %v2004 = vpop.permute.xlu0 %2003
        %2005 = vrot.lane.b32.xlu0 %v1976, 64
        %v2006 = vpop.permute.xlu0 %2005
        %2007 = vrot.lane.b32.xlu0 %v1977, 64
        %v2008 = vpop.permute.xlu0 %2007
        %2009 = vrot.lane.b32.xlu0 %v1978, 64
        %v2010 = vpop.permute.xlu0 %2009
        %v2011 = vunpack.c.l.b16 %v1180
        %v2012 = vunpack.c.l.b16 %v1185
        %v2013 = vunpack.c.l.b16 %v1193
        %v2014 = vunpack.c.l.b16 %v1198
        %v2015 = vunpack.c.l.b16 %v1206
        %v2016 = vunpack.c.l.b16 %v1211
        %v2017 = vunpack.c.l.b16 %v1219
        %v2018 = vunpack.c.l.b16 %v1224
        %v2019 = vunpack.c.l.b16 %v1232
        %v2020 = vunpack.c.l.b16 %v1237
        %v2021 = vunpack.c.l.b16 %v1245
        %v2022 = vunpack.c.l.b16 %v1250
        %v2023 = vunpack.c.l.b16 %v1258
        %v2024 = vunpack.c.l.b16 %v1263
        %v2025 = vunpack.c.l.b16 %v1271
        %v2026 = vunpack.c.l.b16 %v1276
        %v2027 = vunpack.c.l.b16 %v1284
        %v2028 = vunpack.c.l.b16 %v1289
        %v2029 = vunpack.c.l.b16 %v1297
        %v2030 = vunpack.c.l.b16 %v1302
        %v2031 = vunpack.c.l.b16 %v1310
        %v2032 = vunpack.c.l.b16 %v1315
        %v2033 = vunpack.c.l.b16 %v1323
        %v2034 = vunpack.c.l.b16 %v1328
        %v2035 = vunpack.c.l.b16 %v1336
        %v2036 = vunpack.c.l.b16 %v1341
        %v2037 = vunpack.c.l.b16 %v1349
        %v2038 = vunpack.c.l.b16 %v1354
        %v2039 = vunpack.c.l.b16 %v1362
        %v2040 = vunpack.c.l.b16 %v1367
        %v2041 = vunpack.c.l.b16 %v1375
        %v2042 = vunpack.c.l.b16 %v1380
        %v2043 = vpack.c.b16 %v2012, %v2011
        %v2044 = vpack.c.b16 %v2014, %v2013
        %v2045 = vpack.c.b16 %v2016, %v2015
        %v2046 = vpack.c.b16 %v2018, %v2017
        %v2047 = vpack.c.b16 %v2020, %v2019
        %v2048 = vpack.c.b16 %v2022, %v2021
        %v2049 = vpack.c.b16 %v2024, %v2023
        %v2050 = vpack.c.b16 %v2026, %v2025
        %v2051 = vpack.c.b16 %v2028, %v2027
        %v2052 = vpack.c.b16 %v2030, %v2029
        %v2053 = vpack.c.b16 %v2032, %v2031
        %v2054 = vpack.c.b16 %v2034, %v2033
        %v2055 = vpack.c.b16 %v2036, %v2035
        %v2056 = vpack.c.b16 %v2038, %v2037
        %v2057 = vpack.c.b16 %v2040, %v2039
        %v2058 = vpack.c.b16 %v2042, %v2041
        %2059 = vrot.lane.b32.xlu0 %v2043, 80
        %v2060 = vpop.permute.xlu0 %2059
        %2061 = vrot.lane.b32.xlu0 %v2044, 80
        %v2062 = vpop.permute.xlu0 %2061
        %2063 = vrot.lane.b32.xlu0 %v2045, 80
        %v2064 = vpop.permute.xlu0 %2063
        %2065 = vrot.lane.b32.xlu0 %v2046, 80
        %v2066 = vpop.permute.xlu0 %2065
        %2067 = vrot.lane.b32.xlu0 %v2047, 80
        %v2068 = vpop.permute.xlu0 %2067
        %2069 = vrot.lane.b32.xlu0 %v2048, 80
        %v2070 = vpop.permute.xlu0 %2069
        %2071 = vrot.lane.b32.xlu0 %v2049, 80
        %v2072 = vpop.permute.xlu0 %2071
        %2073 = vrot.lane.b32.xlu0 %v2050, 80
        %v2074 = vpop.permute.xlu0 %2073
        %2075 = vrot.lane.b32.xlu0 %v2051, 80
        %v2076 = vpop.permute.xlu0 %2075
        %2077 = vrot.lane.b32.xlu0 %v2052, 80
        %v2078 = vpop.permute.xlu0 %2077
        %2079 = vrot.lane.b32.xlu0 %v2053, 80
        %v2080 = vpop.permute.xlu0 %2079
        %2081 = vrot.lane.b32.xlu0 %v2054, 80
        %v2082 = vpop.permute.xlu0 %2081
        %2083 = vrot.lane.b32.xlu0 %v2055, 80
        %v2084 = vpop.permute.xlu0 %2083
        %2085 = vrot.lane.b32.xlu0 %v2056, 80
        %v2086 = vpop.permute.xlu0 %2085
        %2087 = vrot.lane.b32.xlu0 %v2057, 80
        %v2088 = vpop.permute.xlu0 %2087
        %2089 = vrot.lane.b32.xlu0 %v2058, 80
        %v2090 = vpop.permute.xlu0 %2089
        %v2091 = vunpack.c.l.b16 %v1387
        %v2092 = vunpack.c.l.b16 %v1390
        %v2093 = vunpack.c.l.b16 %v1394
        %v2094 = vunpack.c.l.b16 %v1397
        %v2095 = vunpack.c.l.b16 %v1401
        %v2096 = vunpack.c.l.b16 %v1404
        %v2097 = vunpack.c.l.b16 %v1408
        %v2098 = vunpack.c.l.b16 %v1411
        %v2099 = vunpack.c.l.b16 %v1415
        %v2100 = vunpack.c.l.b16 %v1418
        %v2101 = vunpack.c.l.b16 %v1422
        %v2102 = vunpack.c.l.b16 %v1425
        %v2103 = vunpack.c.l.b16 %v1429
        %v2104 = vunpack.c.l.b16 %v1432
        %v2105 = vunpack.c.l.b16 %v1436
        %v2106 = vunpack.c.l.b16 %v1439
        %v2107 = vunpack.c.l.b16 %v1443
        %v2108 = vunpack.c.l.b16 %v1446
        %v2109 = vunpack.c.l.b16 %v1450
        %v2110 = vunpack.c.l.b16 %v1453
        %v2111 = vunpack.c.l.b16 %v1457
        %v2112 = vunpack.c.l.b16 %v1460
        %v2113 = vunpack.c.l.b16 %v1464
        %v2114 = vunpack.c.l.b16 %v1467
        %v2115 = vunpack.c.l.b16 %v1471
        %v2116 = vunpack.c.l.b16 %v1474
        %v2117 = vunpack.c.l.b16 %v1478
        %v2118 = vunpack.c.l.b16 %v1481
        %v2119 = vunpack.c.l.b16 %v1485
        %v2120 = vunpack.c.l.b16 %v1488
        %v2121 = vunpack.c.l.b16 %v1492
        %v2122 = vunpack.c.l.b16 %v1495
        %v2123 = vpack.c.b16 %v2092, %v2091
        %v2124 = vpack.c.b16 %v2094, %v2093
        %v2125 = vpack.c.b16 %v2096, %v2095
        %v2126 = vpack.c.b16 %v2098, %v2097
        %v2127 = vpack.c.b16 %v2100, %v2099
        %v2128 = vpack.c.b16 %v2102, %v2101
        %v2129 = vpack.c.b16 %v2104, %v2103
        %v2130 = vpack.c.b16 %v2106, %v2105
        %v2131 = vpack.c.b16 %v2108, %v2107
        %v2132 = vpack.c.b16 %v2110, %v2109
        %v2133 = vpack.c.b16 %v2112, %v2111
        %v2134 = vpack.c.b16 %v2114, %v2113
        %v2135 = vpack.c.b16 %v2116, %v2115
        %v2136 = vpack.c.b16 %v2118, %v2117
        %v2137 = vpack.c.b16 %v2120, %v2119
        %v2138 = vpack.c.b16 %v2122, %v2121
        %2139 = vrot.lane.b32.xlu0 %v2123, 96
        %v2140 = vpop.permute.xlu0 %2139
        %2141 = vrot.lane.b32.xlu0 %v2124, 96
        %v2142 = vpop.permute.xlu0 %2141
        %2143 = vrot.lane.b32.xlu0 %v2125, 96
        %v2144 = vpop.permute.xlu0 %2143
        %2145 = vrot.lane.b32.xlu0 %v2126, 96
        %v2146 = vpop.permute.xlu0 %2145
        %2147 = vrot.lane.b32.xlu0 %v2127, 96
        %v2148 = vpop.permute.xlu0 %2147
        %2149 = vrot.lane.b32.xlu0 %v2128, 96
        %v2150 = vpop.permute.xlu0 %2149
        %2151 = vrot.lane.b32.xlu0 %v2129, 96
        %v2152 = vpop.permute.xlu0 %2151
        %2153 = vrot.lane.b32.xlu0 %v2130, 96
        %v2154 = vpop.permute.xlu0 %2153
        %2155 = vrot.lane.b32.xlu0 %v2131, 96
        %v2156 = vpop.permute.xlu0 %2155
        %2157 = vrot.lane.b32.xlu0 %v2132, 96
        %v2158 = vpop.permute.xlu0 %2157
        %2159 = vrot.lane.b32.xlu0 %v2133, 96
        %v2160 = vpop.permute.xlu0 %2159
        %2161 = vrot.lane.b32.xlu0 %v2134, 96
        %v2162 = vpop.permute.xlu0 %2161
        %2163 = vrot.lane.b32.xlu0 %v2135, 96
        %v2164 = vpop.permute.xlu0 %2163
        %2165 = vrot.lane.b32.xlu0 %v2136, 96
        %v2166 = vpop.permute.xlu0 %2165
        %2167 = vrot.lane.b32.xlu0 %v2137, 96
        %v2168 = vpop.permute.xlu0 %2167
        %2169 = vrot.lane.b32.xlu0 %v2138, 96
        %v2170 = vpop.permute.xlu0 %2169
        %v2171 = vunpack.c.l.b16 %v1503
        %v2172 = vunpack.c.l.b16 %v1507
        %v2173 = vunpack.c.l.b16 %v1512
        %v2174 = vunpack.c.l.b16 %v1516
        %v2175 = vunpack.c.l.b16 %v1521
        %v2176 = vunpack.c.l.b16 %v1525
        %v2177 = vunpack.c.l.b16 %v1530
        %v2178 = vunpack.c.l.b16 %v1534
        %v2179 = vunpack.c.l.b16 %v1539
        %v2180 = vunpack.c.l.b16 %v1543
        %v2181 = vunpack.c.l.b16 %v1548
        %v2182 = vunpack.c.l.b16 %v1552
        %v2183 = vunpack.c.l.b16 %v1557
        %v2184 = vunpack.c.l.b16 %v1561
        %v2185 = vunpack.c.l.b16 %v1566
        %v2186 = vunpack.c.l.b16 %v1570
        %v2187 = vunpack.c.l.b16 %v1575
        %v2188 = vunpack.c.l.b16 %v1579
        %v2189 = vunpack.c.l.b16 %v1584
        %v2190 = vunpack.c.l.b16 %v1588
        %v2191 = vunpack.c.l.b16 %v1593
        %v2192 = vunpack.c.l.b16 %v1597
        %v2193 = vunpack.c.l.b16 %v1602
        %v2194 = vunpack.c.l.b16 %v1606
        %v2195 = vunpack.c.l.b16 %v1611
        %v2196 = vunpack.c.l.b16 %v1615
        %v2197 = vunpack.c.l.b16 %v1620
        %v2198 = vunpack.c.l.b16 %v1624
        %v2199 = vunpack.c.l.b16 %v1629
        %v2200 = vunpack.c.l.b16 %v1633
        %v2201 = vunpack.c.l.b16 %v1638
        %v2202 = vunpack.c.l.b16 %v1642
        %v2203 = vpack.c.b16 %v2172, %v2171
        %v2204 = vpack.c.b16 %v2174, %v2173
        %v2205 = vpack.c.b16 %v2176, %v2175
        %v2206 = vpack.c.b16 %v2178, %v2177
        %v2207 = vpack.c.b16 %v2180, %v2179
        %v2208 = vpack.c.b16 %v2182, %v2181
        %v2209 = vpack.c.b16 %v2184, %v2183
        %v2210 = vpack.c.b16 %v2186, %v2185
        %v2211 = vpack.c.b16 %v2188, %v2187
        %v2212 = vpack.c.b16 %v2190, %v2189
        %v2213 = vpack.c.b16 %v2192, %v2191
        %v2214 = vpack.c.b16 %v2194, %v2193
        %v2215 = vpack.c.b16 %v2196, %v2195
        %v2216 = vpack.c.b16 %v2198, %v2197
        %v2217 = vpack.c.b16 %v2200, %v2199
        %v2218 = vpack.c.b16 %v2202, %v2201
        %2219 = vrot.lane.b32.xlu0 %v2203, 112
        %v2220 = vpop.permute.xlu0 %2219
        %2221 = vrot.lane.b32.xlu0 %v2204, 112
        %v2222 = vpop.permute.xlu0 %2221
        %2223 = vrot.lane.b32.xlu0 %v2205, 112
        %v2224 = vpop.permute.xlu0 %2223
        %2225 = vrot.lane.b32.xlu0 %v2206, 112
        %v2226 = vpop.permute.xlu0 %2225
        %2227 = vrot.lane.b32.xlu0 %v2207, 112
        %v2228 = vpop.permute.xlu0 %2227
        %2229 = vrot.lane.b32.xlu0 %v2208, 112
        %v2230 = vpop.permute.xlu0 %2229
        %2231 = vrot.lane.b32.xlu0 %v2209, 112
        %v2232 = vpop.permute.xlu0 %2231
        %2233 = vrot.lane.b32.xlu0 %v2210, 112
        %v2234 = vpop.permute.xlu0 %2233
        %2235 = vrot.lane.b32.xlu0 %v2211, 112
        %v2236 = vpop.permute.xlu0 %2235
        %2237 = vrot.lane.b32.xlu0 %v2212, 112
        %v2238 = vpop.permute.xlu0 %2237
        %2239 = vrot.lane.b32.xlu0 %v2213, 112
        %v2240 = vpop.permute.xlu0 %2239
        %2241 = vrot.lane.b32.xlu0 %v2214, 112
        %v2242 = vpop.permute.xlu0 %2241
        %2243 = vrot.lane.b32.xlu0 %v2215, 112
        %v2244 = vpop.permute.xlu0 %2243
        %2245 = vrot.lane.b32.xlu0 %v2216, 112
        %v2246 = vpop.permute.xlu0 %2245
        %2247 = vrot.lane.b32.xlu0 %v2217, 112
        %v2248 = vpop.permute.xlu0 %2247
        %2249 = vrot.lane.b32.xlu0 %v2218, 112
        %v2250 = vpop.permute.xlu0 %2249
        %v2251 = vunpack.c.l.b16 %v216
        %v2252 = vunpack.c.l.b16 %v219
        %v2253 = vunpack.c.l.b16 %v222
        %v2254 = vunpack.c.l.b16 %v225
        %v2255 = vunpack.c.l.b16 %v228
        %v2256 = vunpack.c.l.b16 %v231
        %v2257 = vunpack.c.l.b16 %v234
        %v2258 = vunpack.c.l.b16 %v237
        %v2259 = vunpack.c.l.b16 %v240
        %v2260 = vunpack.c.l.b16 %v243
        %v2261 = vunpack.c.l.b16 %v246
        %v2262 = vunpack.c.l.b16 %v249
        %v2263 = vunpack.c.l.b16 %v252
        %v2264 = vunpack.c.l.b16 %v255
        %v2265 = vunpack.c.l.b16 %v258
        %v2266 = vunpack.c.l.b16 %v261
        %v2267 = vpack.c.b16 %v2251, %v1644
        %v2268 = vpack.c.b16 %v2252, %v1646
        %v2269 = vpack.c.b16 %v2253, %v1648
        %v2270 = vpack.c.b16 %v2254, %v1650
        %v2271 = vpack.c.b16 %v2255, %v1652
        %v2272 = vpack.c.b16 %v2256, %v1654
        %v2273 = vpack.c.b16 %v2257, %v1656
        %v2274 = vpack.c.b16 %v2258, %v1658
        %v2275 = vpack.c.b16 %v2259, %v1660
        %v2276 = vpack.c.b16 %v2260, %v1662
        %v2277 = vpack.c.b16 %v2261, %v1664
        %v2278 = vpack.c.b16 %v2262, %v1666
        %v2279 = vpack.c.b16 %v2263, %v1668
        %v2280 = vpack.c.b16 %v2264, %v1670
        %v2281 = vpack.c.b16 %v2265, %v1672
        %v2282 = vpack.c.b16 %v2266, %v1674
        %vm2283 = vcmask 130048
        %v2286 = vsel %vm2283, %v1675, %v1740
        %v2289 = vsel %vm2283, %v1676, %v1742
        %v2292 = vsel %vm2283, %v1677, %v1744
        %v2295 = vsel %vm2283, %v1678, %v1746
        %v2298 = vsel %vm2283, %v1679, %v1748
        %v2301 = vsel %vm2283, %v1680, %v1750
        %v2304 = vsel %vm2283, %v1681, %v1752
        %v2307 = vsel %vm2283, %v1682, %v1754
        %v2310 = vsel %vm2283, %v1683, %v1756
        %v2313 = vsel %vm2283, %v1684, %v1758
        %v2316 = vsel %vm2283, %v1685, %v1760
        %v2319 = vsel %vm2283, %v1686, %v1762
        %v2322 = vsel %vm2283, %v1687, %v1764
        %v2325 = vsel %vm2283, %v1688, %v1766
        %v2328 = vsel %vm2283, %v1689, %v1768
        %v2331 = vsel %vm2283, %v1690, %v1770
        %vm2332 = vcmask 261120
        %v2334 = vsel %vm2332, %v2286, %v1820
        %v2336 = vsel %vm2332, %v2289, %v1822
        %v2338 = vsel %vm2332, %v2292, %v1824
        %v2340 = vsel %vm2332, %v2295, %v1826
        %v2342 = vsel %vm2332, %v2298, %v1828
        %v2344 = vsel %vm2332, %v2301, %v1830
        %v2346 = vsel %vm2332, %v2304, %v1832
        %v2348 = vsel %vm2332, %v2307, %v1834
        %v2350 = vsel %vm2332, %v2310, %v1836
        %v2352 = vsel %vm2332, %v2313, %v1838
        %v2354 = vsel %vm2332, %v2316, %v1840
        %v2356 = vsel %vm2332, %v2319, %v1842
        %v2358 = vsel %vm2332, %v2322, %v1844
        %v2360 = vsel %vm2332, %v2325, %v1846
        %v2362 = vsel %vm2332, %v2328, %v1848
        %v2364 = vsel %vm2332, %v2331, %v1850
        %vm2365 = vcmask 392192
        %v2367 = vsel %vm2365, %v2334, %v1900
        %v2369 = vsel %vm2365, %v2336, %v1902
        %v2371 = vsel %vm2365, %v2338, %v1904
        %v2373 = vsel %vm2365, %v2340, %v1906
        %v2375 = vsel %vm2365, %v2342, %v1908
        %v2377 = vsel %vm2365, %v2344, %v1910
        %v2379 = vsel %vm2365, %v2346, %v1912
        %v2381 = vsel %vm2365, %v2348, %v1914
        %v2383 = vsel %vm2365, %v2350, %v1916
        %v2385 = vsel %vm2365, %v2352, %v1918
        %v2387 = vsel %vm2365, %v2354, %v1920
        %v2389 = vsel %vm2365, %v2356, %v1922
        %v2391 = vsel %vm2365, %v2358, %v1924
        %v2393 = vsel %vm2365, %v2360, %v1926
        %v2395 = vsel %vm2365, %v2362, %v1928
        %v2397 = vsel %vm2365, %v2364, %v1930
        %v2399 = vsel %vm172, %v2367, %v1980
        %v2401 = vsel %vm172, %v2369, %v1982
        %v2403 = vsel %vm172, %v2371, %v1984
        %v2405 = vsel %vm172, %v2373, %v1986
        %v2407 = vsel %vm172, %v2375, %v1988
        %v2409 = vsel %vm172, %v2377, %v1990
        %v2411 = vsel %vm172, %v2379, %v1992
        %v2413 = vsel %vm172, %v2381, %v1994
        %v2415 = vsel %vm172, %v2383, %v1996
        %v2417 = vsel %vm172, %v2385, %v1998
        %v2419 = vsel %vm172, %v2387, %v2000
        %v2421 = vsel %vm172, %v2389, %v2002
        %v2423 = vsel %vm172, %v2391, %v2004
        %v2425 = vsel %vm172, %v2393, %v2006
        %v2427 = vsel %vm172, %v2395, %v2008
        %v2429 = vsel %vm172, %v2397, %v2010
        %vm2430 = vcmask 654336
        %v2432 = vsel %vm2430, %v2399, %v2060
        %v2434 = vsel %vm2430, %v2401, %v2062
        %v2436 = vsel %vm2430, %v2403, %v2064
        %v2438 = vsel %vm2430, %v2405, %v2066
        %v2440 = vsel %vm2430, %v2407, %v2068
        %v2442 = vsel %vm2430, %v2409, %v2070
        %v2444 = vsel %vm2430, %v2411, %v2072
        %v2446 = vsel %vm2430, %v2413, %v2074
        %v2448 = vsel %vm2430, %v2415, %v2076
        %v2450 = vsel %vm2430, %v2417, %v2078
        %v2452 = vsel %vm2430, %v2419, %v2080
        %v2454 = vsel %vm2430, %v2421, %v2082
        %v2456 = vsel %vm2430, %v2423, %v2084
        %v2458 = vsel %vm2430, %v2425, %v2086
        %v2460 = vsel %vm2430, %v2427, %v2088
        %v2462 = vsel %vm2430, %v2429, %v2090
        %vm2463 = vcmask 785408
        %v2465 = vsel %vm2463, %v2432, %v2140
        %v2467 = vsel %vm2463, %v2434, %v2142
        %v2469 = vsel %vm2463, %v2436, %v2144
        %v2471 = vsel %vm2463, %v2438, %v2146
        %v2473 = vsel %vm2463, %v2440, %v2148
        %v2475 = vsel %vm2463, %v2442, %v2150
        %v2477 = vsel %vm2463, %v2444, %v2152
        %v2479 = vsel %vm2463, %v2446, %v2154
        %v2481 = vsel %vm2463, %v2448, %v2156
        %v2483 = vsel %vm2463, %v2450, %v2158
        %v2485 = vsel %vm2463, %v2452, %v2160
        %v2487 = vsel %vm2463, %v2454, %v2162
        %v2489 = vsel %vm2463, %v2456, %v2164
        %v2491 = vsel %vm2463, %v2458, %v2166
        %v2493 = vsel %vm2463, %v2460, %v2168
        %v2495 = vsel %vm2463, %v2462, %v2170
        %vm2496 = vcmask 916480
        %v2498 = vsel %vm2496, %v2465, %v2220
        %v2501 = vsel %vm2496, %v2467, %v2222
        %v2504 = vsel %vm2496, %v2469, %v2224
        %v2507 = vsel %vm2496, %v2471, %v2226
        %v2510 = vsel %vm2496, %v2473, %v2228
        %v2513 = vsel %vm2496, %v2475, %v2230
        %v2516 = vsel %vm2496, %v2477, %v2232
        %v2519 = vsel %vm2496, %v2479, %v2234
        %v2522 = vsel %vm2496, %v2481, %v2236
        %v2525 = vsel %vm2496, %v2483, %v2238
        %v2528 = vsel %vm2496, %v2485, %v2240
        %v2531 = vsel %vm2496, %v2487, %v2242
        %v2534 = vsel %vm2496, %v2489, %v2244
        %v2537 = vsel %vm2496, %v2491, %v2246
        %v2540 = vsel %vm2496, %v2493, %v2248
        %v2543 = vsel %vm2496, %v2495, %v2250
        %v2545 = vld [vmem:[#allocation2] sm:$0xff]
        %v2546 = vld [vmem:[#allocation2 + $0x8] sm:$0xff]
        %v2547 = vld [vmem:[#allocation2 + $0x10] sm:$0xff]
        %v2548 = vld [vmem:[#allocation2 + $0x18] sm:$0xff]
        %v2549 = vld [vmem:[#allocation2 + $0x20] sm:$0xff]
        %v2550 = vld [vmem:[#allocation2 + $0x28] sm:$0xff]
        %v2551 = vld [vmem:[#allocation2 + $0x30] sm:$0xff]
        %v2552 = vld [vmem:[#allocation2 + $0x38] sm:$0xff]
        %v2553 = vld [vmem:[#allocation2 + $0x40] sm:$0xff]
        %v2554 = vld [vmem:[#allocation2 + $0x48] sm:$0xff]
        %v2555 = vld [vmem:[#allocation2 + $0x50] sm:$0xff]
        %v2556 = vld [vmem:[#allocation2 + $0x58] sm:$0xff]
        %v2557 = vld [vmem:[#allocation2 + $0x60] sm:$0xff]
        %v2558 = vld [vmem:[#allocation2 + $0x68] sm:$0xff]
        %v2559 = vld [vmem:[#allocation2 + $0x70] sm:$0xff]
        %v2560 = vld [vmem:[#allocation2 + $0x78] sm:$0xff]
        %v2561 = vld [vmem:[#allocation2 + $0x80] sm:$0xff]
        %v2562 = vld [vmem:[#allocation2 + $0x88] sm:$0xff]
        %v2563 = vld [vmem:[#allocation2 + $0x90] sm:$0xff]
        %v2564 = vld [vmem:[#allocation2 + $0x98] sm:$0xff]
        %v2565 = vld [vmem:[#allocation2 + $0xa0] sm:$0xff]
        %v2566 = vld [vmem:[#allocation2 + $0xa8] sm:$0xff]
        %v2567 = vld [vmem:[#allocation2 + $0xb0] sm:$0xff]
        %v2568 = vld [vmem:[#allocation2 + $0xb8] sm:$0xff]
        %v2569 = vld [vmem:[#allocation2 + $0xc0] sm:$0xff]
        %v2570 = vld [vmem:[#allocation2 + $0xc8] sm:$0xff]
        %v2571 = vld [vmem:[#allocation2 + $0xd0] sm:$0xff]
        %v2572 = vld [vmem:[#allocation2 + $0xd8] sm:$0xff]
        %v2573 = vld [vmem:[#allocation2 + $0xe0] sm:$0xff]
        %v2574 = vld [vmem:[#allocation2 + $0xe8] sm:$0xff]
        %v2575 = vld [vmem:[#allocation2 + $0xf0] sm:$0xff]
        %v2576 = vld [vmem:[#allocation2 + $0xf8] sm:$0xff]
        %s2577 = smul.u32 %s206, 18
        %s2578 = smul.addr %s2577, 4
        %s2579 = scalar_lea.vmem %s1, %s2578
        %v2580 = vld [vmem:[%s2579] sm:$0xf]
        %v2581 = vld [vmem:[%s2579 + $0x4] sm:$0xf]
        %v2582 = vld [vmem:[%s2579 + $0x8] sm:$0xf]
        %v2583 = vld [vmem:[%s2579 + $0xc] sm:$0xf]
        %v2584 = vld [vmem:[%s2579 + $0x10] sm:$0xf]
        %v2585 = vld [vmem:[%s2579 + $0x14] sm:$0xf]
        %v2586 = vld [vmem:[%s2579 + $0x18] sm:$0xf]
        %v2587 = vld [vmem:[%s2579 + $0x1c] sm:$0xf]
        %v2588 = vld [vmem:[%s2579 + $0x20] sm:$0xf]
        %v2589 = vld [vmem:[%s2579 + $0x24] sm:$0xf]
        %v2590 = vld [vmem:[%s2579 + $0x28] sm:$0xf]
        %v2591 = vld [vmem:[%s2579 + $0x2c] sm:$0xf]
        %v2592 = vld [vmem:[%s2579 + $0x30] sm:$0xf]
        %v2593 = vld [vmem:[%s2579 + $0x34] sm:$0xf]
        %v2594 = vld [vmem:[%s2579 + $0x38] sm:$0xf]
        %v2595 = vld [vmem:[%s2579 + $0x3c] sm:$0xf]
        %v2596 = vld [vmem:[%s2579 + $0x40] sm:$0xf]
        %v2597 = vld [vmem:[%s2579 + $0x44] sm:$0xf]
        %v2616 = vunpack.c.l.b16 %v2580
        %v2617 = vunpack.c.l.b16 %v2581
        %v2618 = vunpack.c.l.b16 %v2582
        %v2619 = vunpack.c.l.b16 %v2583
        %v2620 = vunpack.c.l.b16 %v2584
        %v2621 = vunpack.c.l.b16 %v2585
        %v2622 = vunpack.c.l.b16 %v2586
        %v2623 = vunpack.c.l.b16 %v2587
        %v2624 = vunpack.c.l.b16 %v2588
        %v2625 = vunpack.c.l.b16 %v2589
        %v2626 = vunpack.c.l.b16 %v2590
        %v2627 = vunpack.c.l.b16 %v2591
        %v2628 = vunpack.c.l.b16 %v2592
        %v2629 = vunpack.c.l.b16 %v2593
        %v2630 = vunpack.c.l.b16 %v2594
        %v2631 = vunpack.c.l.b16 %v2595
        %v2632 = vunpack.c.l.b16 %v2596
        %v2633 = vunpack.c.l.b16 %v2597
        %v2634 = vpack.c.b16 %v2617, %v2616
        %v2635 = vpack.c.b16 %v2619, %v2618
        %v2636 = vpack.c.b16 %v2621, %v2620
        %v2637 = vpack.c.b16 %v2623, %v2622
        %v2638 = vpack.c.b16 %v2625, %v2624
        %v2639 = vpack.c.b16 %v2627, %v2626
        %v2640 = vpack.c.b16 %v2629, %v2628
        %v2641 = vpack.c.b16 %v2631, %v2630
        %v2642 = vpack.c.b16 %v2633, %v2632
        %v2653 = vsel %vm2283, %v2267, 0
        %v2656 = vsel %vm2283, %v2268, 0
        %v2659 = vsel %vm2283, %v2269, 0
        %v2662 = vsel %vm2283, %v2270, 0
        %v2665 = vsel %vm2283, %v2271, 0
        %v2668 = vsel %vm2283, %v2272, 0
        %v2671 = vsel %vm2283, %v2273, 0
        %v2674 = vsel %vm2283, %v2274, 0
        %v2677 = vsel %vm2283, %v2275, 0
        %v2680 = vsel %vm2283, %v2276, 0
        %v2683 = vsel %vm2283, %v2277, 0
        %v2686 = vsel %vm2283, %v2278, 0
        %v2689 = vsel %vm2283, %v2279, 0
        %v2692 = vsel %vm2283, %v2280, 0
        %v2695 = vsel %vm2283, %v2281, 0
        %v2698 = vsel %vm2283, %v2282, 0
        %2700 = vmatprep.subr.bf16.mxu0 0
        %2701 = vmatpush1.bf16.msra.mxu0 %v2634
        %2702 = vmatprep.subr.bf16.mxu0 0
        %2703 = vmatpush1.bf16.msra.mxu0 %v2635
        %2704 = vmatprep.subr.bf16.mxu0 0
        %2705 = vmatpush1.bf16.msra.mxu0 %v2636
        %2706 = vmatprep.subr.bf16.mxu0 0
        %2707 = vmatpush1.bf16.msra.mxu0 %v2637
        %2708 = vmatprep.subr.bf16.mxu0 0
        %2709 = vmatpush1.bf16.msra.mxu0 %v2638
        %2710 = vmatprep.subr.bf16.mxu0 0
        %2711 = vmatpush1.bf16.msra.mxu0 %v2639
        %2712 = vmatprep.subr.bf16.mxu0 0
        %2713 = vmatpush1.bf16.msra.mxu0 %v2640
        %2714 = vmatprep.subr.bf16.mxu0 0
        %2715 = vmatpush1.bf16.msra.mxu0 %v2641
        %2716 = vmatprep.subr.bf16.mxu0 0
        %2717 = vmatpush1.bf16.msra.mxu0 %v2642
        %2718 = vmatprep.subr.bf16.mxu0 0
        %2719 = vmatpush1.bf16.msra.mxu0 0
        %2720 = vmatprep.subr.bf16.mxu0 0
        %2721 = vmatpush1.bf16.msra.mxu0 0
        %2722 = vmatprep.subr.bf16.mxu0 0
        %2723 = vmatpush1.bf16.msra.mxu0 0
        %2724 = vmatprep.subr.bf16.mxu0 0
        %2725 = vmatpush1.bf16.msra.mxu0 0
        %2726 = vmatprep.subr.bf16.mxu0 0
        %2727 = vmatpush1.bf16.msra.mxu0 0
        %2728 = vmatprep.subr.bf16.mxu0 0
        %2729 = vmatpush1.bf16.msra.mxu0 0
        %2730 = vmatprep.subr.bf16.mxu0 0
        %2731 = vmatpush1.bf16.msra.mxu0 0
        %2732 = vmatprep.mubr.bf16.mxu0 %v2653
        %2733 = vmatmul.mubr.bf16.gmra.mrb[0].mxu0 %v2498
        %v2734 = vpop.f32.mrb[0].mxu0
        %v2735 = vadd.f32 0.0, %v2734
        %v2736 = vpop.f32.mrb[0].mxu0
        %v2737 = vpop.f32.mrb[0].mxu0
        %v2738 = vadd.f32 0.0, %v2737
        %v2739 = vpop.f32.mrb[0].mxu0
        %2740 = vmatprep.mubr.bf16.mxu0 %v2656
        %2741 = vmatmul.mubr.bf16.gmra.mrb[0].mxu0 %v2501
        %v2742 = vpop.f32.mrb[0].mxu0
        %v2743 = vadd.f32 0.0, %v2742
        %v2744 = vpop.f32.mrb[0].mxu0
        %v2745 = vpop.f32.mrb[0].mxu0
        %v2746 = vadd.f32 0.0, %v2745
        %v2747 = vpop.f32.mrb[0].mxu0
        %2748 = vmatprep.mubr.bf16.mxu0 %v2659
        %2749 = vmatmul.mubr.bf16.gmra.mrb[0].mxu0 %v2504
        %v2750 = vpop.f32.mrb[0].mxu0
        %v2751 = vadd.f32 0.0, %v2750
        %v2752 = vpop.f32.mrb[0].mxu0
        %v2753 = vpop.f32.mrb[0].mxu0
        %v2754 = vadd.f32 0.0, %v2753
        %v2755 = vpop.f32.mrb[0].mxu0
        %2756 = vmatprep.mubr.bf16.mxu0 %v2662
        %2757 = vmatmul.mubr.bf16.gmra.mrb[0].mxu0 %v2507
        %v2758 = vpop.f32.mrb[0].mxu0
        %v2759 = vadd.f32 0.0, %v2758
        %v2760 = vpop.f32.mrb[0].mxu0
        %v2761 = vpop.f32.mrb[0].mxu0
        %v2762 = vadd.f32 0.0, %v2761
        %v2763 = vpop.f32.mrb[0].mxu0
        %2764 = vmatprep.mubr.bf16.mxu0 %v2665
        %2765 = vmatmul.mubr.bf16.gmra.mrb[0].mxu0 %v2510
        %v2766 = vpop.f32.mrb[0].mxu0
        %v2767 = vadd.f32 0.0, %v2766
        %v2768 = vpop.f32.mrb[0].mxu0
        %v2769 = vpop.f32.mrb[0].mxu0
        %v2770 = vadd.f32 0.0, %v2769
        %v2771 = vpop.f32.mrb[0].mxu0
        %2772 = vmatprep.mubr.bf16.mxu0 %v2668
        %2773 = vmatmul.mubr.bf16.gmra.mrb[0].mxu0 %v2513
        %v2774 = vpop.f32.mrb[0].mxu0
        %v2775 = vadd.f32 0.0, %v2774
        %v2776 = vpop.f32.mrb[0].mxu0
        %v2777 = vpop.f32.mrb[0].mxu0
        %v2778 = vadd.f32 0.0, %v2777
        %v2779 = vpop.f32.mrb[0].mxu0
        %2780 = vmatprep.mubr.bf16.mxu0 %v2671
        %2781 = vmatmul.mubr.bf16.gmra.mrb[0].mxu0 %v2516
        %v2782 = vpop.f32.mrb[0].mxu0
        %v2783 = vadd.f32 0.0, %v2782
        %v2784 = vpop.f32.mrb[0].mxu0
        %v2785 = vpop.f32.mrb[0].mxu0
        %v2786 = vadd.f32 0.0, %v2785
        %v2787 = vpop.f32.mrb[0].mxu0
        %2788 = vmatprep.mubr.bf16.mxu0 %v2674
        %2789 = vmatmul.mubr.bf16.gmra.mrb[0].mxu0 %v2519
        %v2790 = vpop.f32.mrb[0].mxu0
        %v2791 = vadd.f32 0.0, %v2790
        %v2792 = vpop.f32.mrb[0].mxu0
        %v2793 = vpop.f32.mrb[0].mxu0
        %v2794 = vadd.f32 0.0, %v2793
        %v2795 = vpop.f32.mrb[0].mxu0
        %2796 = vmatprep.mubr.bf16.mxu0 %v2677
        %2797 = vmatmul.mubr.bf16.gmra.mrb[0].mxu0 %v2522
        %v2798 = vpop.f32.mrb[0].mxu0
        %v2799 = vadd.f32 0.0, %v2798
        %v2800 = vpop.f32.mrb[0].mxu0
        %v2801 = vpop.f32.mrb[0].mxu0
        %v2802 = vadd.f32 0.0, %v2801
        %v2803 = vpop.f32.mrb[0].mxu0
        %2804 = vmatprep.mubr.bf16.mxu0 %v2680
        %2805 = vmatmul.mubr.bf16.gmra.mrb[0].mxu0 %v2525
        %v2806 = vpop.f32.mrb[0].mxu0
        %v2807 = vadd.f32 0.0, %v2806
        %v2808 = vpop.f32.mrb[0].mxu0
        %v2809 = vpop.f32.mrb[0].mxu0
        %v2810 = vadd.f32 0.0, %v2809
        %v2811 = vpop.f32.mrb[0].mxu0
        %2812 = vmatprep.mubr.bf16.mxu0 %v2683
        %2813 = vmatmul.mubr.bf16.gmra.mrb[0].mxu0 %v2528
        %v2814 = vpop.f32.mrb[0].mxu0
        %v2815 = vadd.f32 0.0, %v2814
        %v2816 = vpop.f32.mrb[0].mxu0
        %v2817 = vpop.f32.mrb[0].mxu0
        %v2818 = vadd.f32 0.0, %v2817
        %v2819 = vpop.f32.mrb[0].mxu0
        %2820 = vmatprep.mubr.bf16.mxu0 %v2686
        %2821 = vmatmul.mubr.bf16.gmra.mrb[0].mxu0 %v2531
        %v2822 = vpop.f32.mrb[0].mxu0
        %v2823 = vadd.f32 0.0, %v2822
        %v2824 = vpop.f32.mrb[0].mxu0
        %v2825 = vpop.f32.mrb[0].mxu0
        %v2826 = vadd.f32 0.0, %v2825
        %v2827 = vpop.f32.mrb[0].mxu0
        %2828 = vmatprep.mubr.bf16.mxu0 %v2689
        %2829 = vmatmul.mubr.bf16.gmra.mrb[0].mxu0 %v2534
        %v2830 = vpop.f32.mrb[0].mxu0
        %v2831 = vadd.f32 0.0, %v2830
        %v2832 = vpop.f32.mrb[0].mxu0
        %v2833 = vpop.f32.mrb[0].mxu0
        %v2834 = vadd.f32 0.0, %v2833
        %v2835 = vpop.f32.mrb[0].mxu0
        %2836 = vmatprep.mubr.bf16.mxu0 %v2692
        %2837 = vmatmul.mubr.bf16.gmra.mrb[0].mxu0 %v2537
        %v2838 = vpop.f32.mrb[0].mxu0
        %v2839 = vadd.f32 0.0, %v2838
        %v2840 = vpop.f32.mrb[0].mxu0
        %v2841 = vpop.f32.mrb[0].mxu0
        %v2842 = vadd.f32 0.0, %v2841
        %v2843 = vpop.f32.mrb[0].mxu0
        %2844 = vmatprep.mubr.bf16.mxu0 %v2695
        %2845 = vmatmul.mubr.bf16.gmra.mrb[0].mxu0 %v2540
        %v2846 = vpop.f32.mrb[0].mxu0
        %v2847 = vadd.f32 0.0, %v2846
        %v2848 = vpop.f32.mrb[0].mxu0
        %v2849 = vpop.f32.mrb[0].mxu0
        %v2850 = vadd.f32 0.0, %v2849
        %v2851 = vpop.f32.mrb[0].mxu0
        %2852 = vmatprep.mubr.bf16.mxu0 %v2698
        %2853 = vmatmul.mubr.bf16.gmra.mrb[0].mxu0 %v2543
        %v2854 = vpop.f32.mrb[0].mxu0
        %v2855 = vadd.f32 0.0, %v2854
        %v2856 = vpop.f32.mrb[0].mxu0
        %v2857 = vpop.f32.mrb[0].mxu0
        %v2858 = vadd.f32 0.0, %v2857
        %v2859 = vpop.f32.mrb[0].mxu0
        %2860 = vdwg.mxu0
        %v2861 = vadd.f32 %v2545, %v2735
        %v2862 = vadd.f32 %v2546, %v2738
        %v2863 = vadd.f32 %v2547, %v2743
        %v2864 = vadd.f32 %v2548, %v2746
        %v2865 = vadd.f32 %v2549, %v2751
        %v2866 = vadd.f32 %v2550, %v2754
        %v2867 = vadd.f32 %v2551, %v2759
        %v2868 = vadd.f32 %v2552, %v2762
        %v2869 = vadd.f32 %v2553, %v2767
        %v2870 = vadd.f32 %v2554, %v2770
        %v2871 = vadd.f32 %v2555, %v2775
        %v2872 = vadd.f32 %v2556, %v2778
        %v2873 = vadd.f32 %v2557, %v2783
        %v2874 = vadd.f32 %v2558, %v2786
        %v2875 = vadd.f32 %v2559, %v2791
        %v2876 = vadd.f32 %v2560, %v2794
        %v2877 = vadd.f32 %v2561, %v2799
        %v2878 = vadd.f32 %v2562, %v2802
        %v2879 = vadd.f32 %v2563, %v2807
        %v2880 = vadd.f32 %v2564, %v2810
        %v2881 = vadd.f32 %v2565, %v2815
        %v2882 = vadd.f32 %v2566, %v2818
        %v2883 = vadd.f32 %v2567, %v2823
        %v2884 = vadd.f32 %v2568, %v2826
        %v2885 = vadd.f32 %v2569, %v2831
        %v2886 = vadd.f32 %v2570, %v2834
        %v2887 = vadd.f32 %v2571, %v2839
        %v2888 = vadd.f32 %v2572, %v2842
        %v2889 = vadd.f32 %v2573, %v2847
        %v2890 = vadd.f32 %v2574, %v2850
        %v2891 = vadd.f32 %v2575, %v2855
        %v2892 = vadd.f32 %v2576, %v2858
        %2893 = vst.msk [vmem:[#allocation2] sm:$0xff] %vm172, %v2861
        %2894 = vst.msk [vmem:[#allocation2 + $0x8] sm:$0xff] %vm172, %v2862
        %2895 = vst.msk [vmem:[#allocation2 + $0x10] sm:$0xff] %vm172, %v2863
        %2896 = vst.msk [vmem:[#allocation2 + $0x18] sm:$0xff] %vm172, %v2864
        %2897 = vst.msk [vmem:[#allocation2 + $0x20] sm:$0xff] %vm172, %v2865
        %2898 = vst.msk [vmem:[#allocation2 + $0x28] sm:$0xff] %vm172, %v2866
        %2899 = vst.msk [vmem:[#allocation2 + $0x30] sm:$0xff] %vm172, %v2867
        %2900 = vst.msk [vmem:[#allocation2 + $0x38] sm:$0xff] %vm172, %v2868
        %2901 = vst.msk [vmem:[#allocation2 + $0x40] sm:$0xff] %vm172, %v2869
        %2902 = vst.msk [vmem:[#allocation2 + $0x48] sm:$0xff] %vm172, %v2870
        %2903 = vst.msk [vmem:[#allocation2 + $0x50] sm:$0xff] %vm172, %v2871
        %2904 = vst.msk [vmem:[#allocation2 + $0x58] sm:$0xff] %vm172, %v2872
        %2905 = vst.msk [vmem:[#allocation2 + $0x60] sm:$0xff] %vm172, %v2873
        %2906 = vst.msk [vmem:[#allocation2 + $0x68] sm:$0xff] %vm172, %v2874
        %2907 = vst.msk [vmem:[#allocation2 + $0x70] sm:$0xff] %vm172, %v2875
        %2908 = vst.msk [vmem:[#allocation2 + $0x78] sm:$0xff] %vm172, %v2876
        %2909 = vst.msk [vmem:[#allocation2 + $0x80] sm:$0xff] %vm172, %v2877
        %2910 = vst.msk [vmem:[#allocation2 + $0x88] sm:$0xff] %vm172, %v2878
        %2911 = vst.msk [vmem:[#allocation2 + $0x90] sm:$0xff] %vm172, %v2879
        %2912 = vst.msk [vmem:[#allocation2 + $0x98] sm:$0xff] %vm172, %v2880
        %2913 = vst.msk [vmem:[#allocation2 + $0xa0] sm:$0xff] %vm172, %v2881
        %2914 = vst.msk [vmem:[#allocation2 + $0xa8] sm:$0xff] %vm172, %v2882
        %2915 = vst.msk [vmem:[#allocation2 + $0xb0] sm:$0xff] %vm172, %v2883
        %2916 = vst.msk [vmem:[#allocation2 + $0xb8] sm:$0xff] %vm172, %v2884
        %2917 = vst.msk [vmem:[#allocation2 + $0xc0] sm:$0xff] %vm172, %v2885
        %2918 = vst.msk [vmem:[#allocation2 + $0xc8] sm:$0xff] %vm172, %v2886
        %2919 = vst.msk [vmem:[#allocation2 + $0xd0] sm:$0xff] %vm172, %v2887
        %2920 = vst.msk [vmem:[#allocation2 + $0xd8] sm:$0xff] %vm172, %v2888
        %2921 = vst.msk [vmem:[#allocation2 + $0xe0] sm:$0xff] %vm172, %v2889
        %2922 = vst.msk [vmem:[#allocation2 + $0xe8] sm:$0xff] %vm172, %v2890
        %2923 = vst.msk [vmem:[#allocation2 + $0xf0] sm:$0xff] %vm172, %v2891
        %2924 = vst.msk [vmem:[#allocation2 + $0xf8] sm:$0xff] %vm172, %v2892
      $region37: #{psa_forward_pallas.1} parent=31 // loop_footer
        %s210 = sadd.s32 1, %s206
      $region38: #{psa_forward_pallas.1} parent=31 // loop_footer_branch
        %205 = sbr.rel target = $region34
      $region39: #{psa_forward_pallas.1} parent=31 // loop_exit
        _
      %v2925 = vld [vmem:[#allocation2] sm:$0xff]
      %v2926 = vld [vmem:[#allocation2 + $0x8] sm:$0xff]
      %v2927 = vld [vmem:[#allocation2 + $0x10] sm:$0xff]
      %v2928 = vld [vmem:[#allocation2 + $0x18] sm:$0xff]
      %v2929 = vld [vmem:[#allocation2 + $0x20] sm:$0xff]
      %v2930 = vld [vmem:[#allocation2 + $0x28] sm:$0xff]
      %v2931 = vld [vmem:[#allocation2 + $0x30] sm:$0xff]
      %v2932 = vld [vmem:[#allocation2 + $0x38] sm:$0xff]
      %v2933 = vld [vmem:[#allocation2 + $0x40] sm:$0xff]
      %v2934 = vld [vmem:[#allocation2 + $0x48] sm:$0xff]
      %v2935 = vld [vmem:[#allocation2 + $0x50] sm:$0xff]
      %v2936 = vld [vmem:[#allocation2 + $0x58] sm:$0xff]
      %v2937 = vld [vmem:[#allocation2 + $0x60] sm:$0xff]
      %v2938 = vld [vmem:[#allocation2 + $0x68] sm:$0xff]
      %v2939 = vld [vmem:[#allocation2 + $0x70] sm:$0xff]
      %v2940 = vld [vmem:[#allocation2 + $0x78] sm:$0xff]
      %v2941 = vld [vmem:[#allocation2 + $0x80] sm:$0xff]
      %v2942 = vld [vmem:[#allocation2 + $0x88] sm:$0xff]
      %v2943 = vld [vmem:[#allocation2 + $0x90] sm:$0xff]
      %v2944 = vld [vmem:[#allocation2 + $0x98] sm:$0xff]
      %v2945 = vld [vmem:[#allocation2 + $0xa0] sm:$0xff]
      %v2946 = vld [vmem:[#allocation2 + $0xa8] sm:$0xff]
      %v2947 = vld [vmem:[#allocation2 + $0xb0] sm:$0xff]
      %v2948 = vld [vmem:[#allocation2 + $0xb8] sm:$0xff]
      %v2949 = vld [vmem:[#allocation2 + $0xc0] sm:$0xff]
      %v2950 = vld [vmem:[#allocation2 + $0xc8] sm:$0xff]
      %v2951 = vld [vmem:[#allocation2 + $0xd0] sm:$0xff]
      %v2952 = vld [vmem:[#allocation2 + $0xd8] sm:$0xff]
      %v2953 = vld [vmem:[#allocation2 + $0xe0] sm:$0xff]
      %v2954 = vld [vmem:[#allocation2 + $0xe8] sm:$0xff]
      %v2955 = vld [vmem:[#allocation2 + $0xf0] sm:$0xff]
      %v2956 = vld [vmem:[#allocation2 + $0xf8] sm:$0xff]
      %v2957 = vsel %vm172, %v2925, 0.0
      %v2958 = vsel %vm172, %v2926, 0.0
      %v2959 = vadd.f32 %v2957, %v2958
      %v2960 = vsel %vm172, %v2927, 0.0
      %v2961 = vadd.f32 %v2959, %v2960
      %v2962 = vsel %vm172, %v2928, 0.0
      %v2963 = vadd.f32 %v2961, %v2962
      %v2964 = vsel %vm172, %v2929, 0.0
      %v2965 = vadd.f32 %v2963, %v2964
      %v2966 = vsel %vm172, %v2930, 0.0
      %v2967 = vadd.f32 %v2965, %v2966
      %v2968 = vsel %vm172, %v2931, 0.0
      %v2969 = vadd.f32 %v2967, %v2968
      %v2970 = vsel %vm172, %v2932, 0.0
      %v2971 = vadd.f32 %v2969, %v2970
      %v2972 = vsel %vm172, %v2933, 0.0
      %v2973 = vadd.f32 %v2971, %v2972
      %v2974 = vsel %vm172, %v2934, 0.0
      %v2975 = vadd.f32 %v2973, %v2974
      %v2976 = vsel %vm172, %v2935, 0.0
      %v2977 = vadd.f32 %v2975, %v2976
      %v2978 = vsel %vm172, %v2936, 0.0
      %v2979 = vadd.f32 %v2977, %v2978
      %v2980 = vsel %vm172, %v2937, 0.0
      %v2981 = vadd.f32 %v2979, %v2980
      %v2982 = vsel %vm172, %v2938, 0.0
      %v2983 = vadd.f32 %v2981, %v2982
      %v2984 = vsel %vm172, %v2939, 0.0
      %v2985 = vadd.f32 %v2983, %v2984
      %v2986 = vsel %vm172, %v2940, 0.0
      %v2987 = vadd.f32 %v2985, %v2986
      %v2988 = vsel %vm172, %v2941, 0.0
      %v2989 = vadd.f32 %v2987, %v2988
      %v2990 = vsel %vm172, %v2942, 0.0
      %v2991 = vadd.f32 %v2989, %v2990
      %v2992 = vsel %vm172, %v2943, 0.0
      %v2993 = vadd.f32 %v2991, %v2992
      %v2994 = vsel %vm172, %v2944, 0.0
      %v2995 = vadd.f32 %v2993, %v2994
      %v2996 = vsel %vm172, %v2945, 0.0
      %v2997 = vadd.f32 %v2995, %v2996
      %v2998 = vsel %vm172, %v2946, 0.0
      %v2999 = vadd.f32 %v2997, %v2998
      %v3000 = vsel %vm172, %v2947, 0.0
      %v3001 = vadd.f32 %v2999, %v3000
      %v3002 = vsel %vm172, %v2948, 0.0
      %v3003 = vadd.f32 %v3001, %v3002
      %v3004 = vsel %vm172, %v2949, 0.0
      %v3005 = vadd.f32 %v3003, %v3004
      %v3006 = vsel %vm172, %v2950, 0.0
      %v3007 = vadd.f32 %v3005, %v3006
      %v3008 = vsel %vm172, %v2951, 0.0
      %v3009 = vadd.f32 %v3007, %v3008
      %v3010 = vsel %vm172, %v2952, 0.0
      %v3011 = vadd.f32 %v3009, %v3010
      %v3012 = vsel %vm172, %v2953, 0.0
      %v3013 = vadd.f32 %v3011, %v3012
      %v3014 = vsel %vm172, %v2954, 0.0
      %v3015 = vadd.f32 %v3013, %v3014
      %v3016 = vsel %vm172, %v2955, 0.0
      %v3017 = vadd.f32 %v3015, %v3016
      %v3018 = vsel %vm172, %v2956, 0.0
      %v3019 = vadd.f32 %v3017, %v3018
      %v3020 = vrot.slane %v3019, 4
      %v3021 = vadd.f32 %v3019, %v3020
      %v3022 = vrot.slane %v3021, 2
      %v3023 = vadd.f32 %v3021, %v3022
      %v3024 = vrot.slane %v3023, 1
      %v3025 = vadd.f32 %v3023, %v3024
      %v3026 = vmul.f32 %v3025, 0.00390625
      %3028 = vrot.lane.b32.xlu0 %v3026, 112
      %v3029 = vpop.permute.xlu0 %3028
      %3031 = vrot.lane.b32.xlu0 %v3026, 96
      %v3032 = vpop.permute.xlu0 %3031
      %3034 = vrot.lane.b32.xlu0 %v3026, 80
      %v3035 = vpop.permute.xlu0 %3034
      %vm3037 = vcmask 1040384
      %v3038 = vsel %vm3037, %v3026, %v3029
      %vm3039 = vcmask 1041408
      %v3040 = vsel %vm3039, %v3038, %v3032
      %vm3041 = vcmask 1042432
      %v3042 = vsel %vm3041, %v3040, %v3035
      %v3043 = vld [vmem:[%s2] sm:$0x1]
      %v3044 = vld [vmem:[%s2 + $0x1] sm:$0x1]
      %v3045 = vld [vmem:[%s2 + $0x2] sm:$0x1]
      %v3046 = vld [vmem:[%s2 + $0x3] sm:$0x1]
      %v3047 = vlaneseq
      %v3048 = vshrl.u32 %v3047, 7
      %v3049 = vsub.s32 0, %v3048
      %v3050 = vrot.slane %v3043, %v3049
      %v3051 = vmul.f32 %v3042, %v3050
      %vm3052 = vcmask 125952
      %v3053 = vsel %vm3052, %v3051, 0.0
      %3054 = vadd.xlane.f32.xlu0 %v3053
      %v3055 = vpop.xlane.xlu0 %3054
      %v3056 = vlaneseq
      %v3057 = vshrl.u32 %v3056, 7
      %v3058 = vsub.s32 0, %v3057
      %v3059 = vrot.slane %v3046, %v3058
      %v3060 = vadd.f32 %v3055, %v3059
      %v3061 = vmax.f32 %v3060, 0.0
      %3063 = vset.pattern.permute.xlu0 0
      %3064 = vperm.xlu0 %3063, %v3061
      %v3065 = vpop.permute.xlu0 %3064
      %v3067 = vlaneseq
      %v3068 = vshrl.u32 %v3067, 7
      %v3069 = vsub.s32 0, %v3068
      %v3070 = vrot.slane %v3044, %v3069
      %v3071 = vmul.f32 %v3065, %v3070
      %v3072 = vlaneseq
      %v3073 = vshrl.u32 %v3072, 7
      %v3074 = vsub.s32 0, %v3073
      %v3075 = vrot.slane %v3045, %v3074
      %v3076 = vadd.f32 %v3071, %v3075
      %v3077 = vxor.u32 %v3076, 2147483648
      %v3078 = vmul.f32 %v3077, 1.442695
      %v3079 = vpow.pop %v3078
      %v3080 = vadd.f32 %v3079, 1.0
      %v3081 = vrcp.pop %v3080
      %v3082 = vmul.f32 1.0, %v3081
      %v3083 = vsel %vm3052, %v3082, -inf
      %v3084 = vrot.slane %v3083, 4
      %v3085 = vmax.f32 %v3083, %v3084
      %v3086 = vrot.slane %v3085, 2
      %v3087 = vmax.f32 %v3085, %v3086
      %v3088 = vrot.slane %v3087, 1
      %v3089 = vmax.f32 %v3087, %v3088
      %v3090 = vsub.f32 %v3082, %v3089
      %v3091 = vmul.f32 %v3090, 1.442695
      %v3092 = vpow.pop %v3091
      %v3093 = vsel %vm3052, %v3092, 0.0
      %v3094 = vrot.slane %v3093, 4
      %v3095 = vadd.f32 %v3093, %v3094
      %v3096 = vrot.slane %v3095, 2
      %v3097 = vadd.f32 %v3095, %v3096
      %v3098 = vrot.slane %v3097, 1
      %v3099 = vadd.f32 %v3097, %v3098
      %v3100 = vrcp.pop %v3099
      %v3101 = vmul.f32 %v3092, %v3100
      %v3103 = vrot.slane %v3101, 1
      %3104 = vrot.lane.b32.xlu0 %v3103, 16
      %v3105 = vpop.permute.xlu0 %3104
      %v3107 = vrot.slane %v3101, 2
      %3108 = vrot.lane.b32.xlu0 %v3107, 32
      %v3109 = vpop.permute.xlu0 %3108
      %v3111 = vrot.slane %v3101, 3
      %3112 = vrot.lane.b32.xlu0 %v3111, 48
      %v3113 = vpop.permute.xlu0 %3112
      %vm3115 = vcmask 130048
      %v3116 = vsel %vm3115, %v3101, %v3105
      %vm3117 = vcmask 261120
      %v3118 = vsel %vm3117, %v3116, %v3109
      %vm3119 = vcmask 392192
      %v3120 = vsel %vm3119, %v3118, %v3113
      %v3121 = vlaneseq
      %v3122 = vshrl.u32 %v3121, 7
      %v3123 = vsub.s32 0, %v3122
      %v3124 = vrot.slane %v3120, %v3123
      %v3125 = vmul.f32 %v2925, %v3124
      %v3126 = vmul.f32 %v2926, %v3124
      %v3127 = vmul.f32 %v2927, %v3124
      %v3128 = vmul.f32 %v2928, %v3124
      %v3129 = vmul.f32 %v2929, %v3124
      %v3130 = vmul.f32 %v2930, %v3124
      %v3131 = vmul.f32 %v2931, %v3124
      %v3132 = vmul.f32 %v2932, %v3124
      %v3133 = vmul.f32 %v2933, %v3124
      %v3134 = vmul.f32 %v2934, %v3124
      %v3135 = vmul.f32 %v2935, %v3124
      %v3136 = vmul.f32 %v2936, %v3124
      %v3137 = vmul.f32 %v2937, %v3124
      %v3138 = vmul.f32 %v2938, %v3124
      %v3139 = vmul.f32 %v2939, %v3124
      %v3140 = vmul.f32 %v2940, %v3124
      %v3141 = vmul.f32 %v2941, %v3124
      %v3142 = vmul.f32 %v2942, %v3124
      %v3143 = vmul.f32 %v2943, %v3124
      %v3144 = vmul.f32 %v2944, %v3124
      %v3145 = vmul.f32 %v2945, %v3124
      %v3146 = vmul.f32 %v2946, %v3124
      %v3147 = vmul.f32 %v2947, %v3124
      %v3148 = vmul.f32 %v2948, %v3124
      %v3149 = vmul.f32 %v2949, %v3124
      %v3150 = vmul.f32 %v2950, %v3124
      %v3151 = vmul.f32 %v2951, %v3124
      %v3152 = vmul.f32 %v2952, %v3124
      %v3153 = vmul.f32 %v2953, %v3124
      %v3154 = vmul.f32 %v2954, %v3124
      %v3155 = vmul.f32 %v2955, %v3124
      %v3156 = vmul.f32 %v2956, %v3124
      %3157 = vxpose.xlu0.b32.start [1/16] %v3125, 128
      %3158 = vxpose.xlu0.b32.cont [2/16] %v3126, 128
      %3159 = vxpose.xlu0.b32.cont [3/16] %v3127, 128
      %3160 = vxpose.xlu0.b32.cont [4/16] %v3128, 128
      %3161 = vxpose.xlu0.b32.cont [5/16] %v3129, 128
      %3162 = vxpose.xlu0.b32.cont [6/16] %v3130, 128
      %3163 = vxpose.xlu0.b32.cont [7/16] %v3131, 128
      %3164 = vxpose.xlu0.b32.cont [8/16] %v3132, 128
      %3165 = vxpose.xlu0.b32.cont [9/16] %v3133, 128
      %3166 = vxpose.xlu0.b32.cont [10/16] %v3134, 128
      %3167 = vxpose.xlu0.b32.cont [11/16] %v3135, 128
      %3168 = vxpose.xlu0.b32.cont [12/16] %v3136, 128
      %3169 = vxpose.xlu0.b32.cont [13/16] %v3137, 128
      %3170 = vxpose.xlu0.b32.cont [14/16] %v3138, 128
      %3171 = vxpose.xlu0.b32.cont [15/16] %v3139, 128
      %3172 = vxpose.xlu0.b32.end [16/16] %v3140, 128
      %v3173 = vpop.trf.xlu0
      %v3174 = vpop.trf.xlu0
      %v3175 = vpop.trf.xlu0
      %v3176 = vpop.trf.xlu0
      %v3177 = vpop.trf.xlu0
      %v3178 = vpop.trf.xlu0
      %v3179 = vpop.trf.xlu0
      %v3180 = vpop.trf.xlu0
      %v3181 = vpop.trf.xlu0
      %v3182 = vpop.trf.xlu0
      %v3183 = vpop.trf.xlu0
      %v3184 = vpop.trf.xlu0
      %v3185 = vpop.trf.xlu0
      %v3186 = vpop.trf.xlu0
      %v3187 = vpop.trf.xlu0
      %v3188 = vpop.trf.xlu0
      %3189 = vxpose.xlu0.b32.start [1/16] %v3141, 128
      %3190 = vxpose.xlu0.b32.cont [2/16] %v3142, 128
      %3191 = vxpose.xlu0.b32.cont [3/16] %v3143, 128
      %3192 = vxpose.xlu0.b32.cont [4/16] %v3144, 128
      %3193 = vxpose.xlu0.b32.cont [5/16] %v3145, 128
      %3194 = vxpose.xlu0.b32.cont [6/16] %v3146, 128
      %3195 = vxpose.xlu0.b32.cont [7/16] %v3147, 128
      %3196 = vxpose.xlu0.b32.cont [8/16] %v3148, 128
      %3197 = vxpose.xlu0.b32.cont [9/16] %v3149, 128
      %3198 = vxpose.xlu0.b32.cont [10/16] %v3150, 128
      %3199 = vxpose.xlu0.b32.cont [11/16] %v3151, 128
      %3200 = vxpose.xlu0.b32.cont [12/16] %v3152, 128
      %3201 = vxpose.xlu0.b32.cont [13/16] %v3153, 128
      %3202 = vxpose.xlu0.b32.cont [14/16] %v3154, 128
      %3203 = vxpose.xlu0.b32.cont [15/16] %v3155, 128
      %3204 = vxpose.xlu0.b32.end [16/16] %v3156, 128
      %v3205 = vpop.trf.xlu0
      %v3206 = vpop.trf.xlu0
      %v3207 = vpop.trf.xlu0
      %v3208 = vpop.trf.xlu0
      %v3209 = vpop.trf.xlu0
      %v3210 = vpop.trf.xlu0
      %v3211 = vpop.trf.xlu0
      %v3212 = vpop.trf.xlu0
      %v3213 = vpop.trf.xlu0
      %v3214 = vpop.trf.xlu0
      %v3215 = vpop.trf.xlu0
      %v3216 = vpop.trf.xlu0
      %v3217 = vpop.trf.xlu0
      %v3218 = vpop.trf.xlu0
      %v3219 = vpop.trf.xlu0
      %v3220 = vpop.trf.xlu0
      %3221 = vst [vmem:[%s170] sm:$0xff] %v3173
      %3222 = vst [vmem:[%s170 + $0x8] sm:$0xff] %v3205
      %3223 = vst [vmem:[%s170 + $0x10] sm:$0xff] %v3174
      %3224 = vst [vmem:[%s170 + $0x18] sm:$0xff] %v3206
      %3225 = vst [vmem:[%s170 + $0x20] sm:$0xff] %v3175
      %3226 = vst [vmem:[%s170 + $0x28] sm:$0xff] %v3207
      %3227 = vst [vmem:[%s170 + $0x30] sm:$0xff] %v3176
      %3228 = vst [vmem:[%s170 + $0x38] sm:$0xff] %v3208
      %3229 = vst [vmem:[%s170 + $0x40] sm:$0xff] %v3177
      %3230 = vst [vmem:[%s170 + $0x48] sm:$0xff] %v3209
      %3231 = vst [vmem:[%s170 + $0x50] sm:$0xff] %v3178
      %3232 = vst [vmem:[%s170 + $0x58] sm:$0xff] %v3210
      %3233 = vst [vmem:[%s170 + $0x60] sm:$0xff] %v3179
      %3234 = vst [vmem:[%s170 + $0x68] sm:$0xff] %v3211
      %3235 = vst [vmem:[%s170 + $0x70] sm:$0xff] %v3180
      %3236 = vst [vmem:[%s170 + $0x78] sm:$0xff] %v3212
      %p3237 = scmp.lt.s32.totalorder %s14, 1
      %s3238 = scalar_select %p3237, %s14, 1
      %s3239 = smul.addr %s3238, 16
      %s3240 = smul.addr %s3239, 8
      %s3241 = scalar_lea.vmem %s3, %s3240
      // Predicated region
      $region40: #{psa_forward_pallas.1} parent=31 // pred_check
        %p3242 = pneg %p100
      $region41: #{psa_forward_pallas.1} parent=31 // pred_check_branch
        %3244 = sbr.rel (%p3242) target = $region43
      $region42: #{psa_forward_pallas.1} parent=31 // pred_region
        _
      $region43: #{psa_forward_pallas.1} parent=31 // pred_fallthru
        _
    $region32: #{psa_forward_pallas.1} parent=5 // pred_fallthru
      _
    %p3245 = scmp.le.s32.totalorder 2, %s9
    // Predicated region
    $region44: #{psa_forward_pallas.1} parent=5 // pred_check
      %p3246 = pneg %p3245
    $region45: #{psa_forward_pallas.1} parent=5 // pred_check_branch
      %3248 = sbr.rel (%p3246) target = $region47
    $region46: #{psa_forward_pallas.1} parent=5 // pred_region
      %s3249 = ssub.s32 %s9, 2
      // Predicated region
      $region48: #{psa_forward_pallas.1} parent=46 // pred_check
        %p3250 = pneg %p106
      $region49: #{psa_forward_pallas.1} parent=46 // pred_check_branch
        %3252 = sbr.rel (%p3250) target = $region51
      $region50: #{psa_forward_pallas.1} parent=46 // pred_region
        %p3253 = scmp.lt.s32.totalorder %s15, 1
        %s3254 = scalar_select %p3253, %s15, 1
        %s3255 = smul.addr %s3254, 16
        %s3256 = smul.addr %s3255, 8
        %s3257 = scalar_lea.vmem %s3, %s3256
      $region51: #{psa_forward_pallas.1} parent=46 // pred_fallthru
        _
    $region47: #{psa_forward_pallas.1} parent=5 // pred_fallthru
      _
  $region6: #{psa_forward_pallas.1} parent=0 // loop_footer
    %s13 = sadd.s32 1, %s9
  $region7: #{psa_forward_pallas.1} parent=0 // loop_footer_branch
    %8 = sbr.rel target = $region3
  $region8: #{psa_forward_pallas.1} parent=0 // loop_exit
    _

</llo_original>
